<compile_context>
chip_gen: v5e
topology: v5e:2x2
jax: 0.10.0
libtpu: 0.0.40
codegen_flags: <defaults>
</compile_context>

<pallas_src>
import functools

import jax
import jax.numpy as jnp
from jax import lax
from jax.experimental import pallas as pl
from jax.experimental.pallas import tpu as pltpu


def lstm_net_kernel(x_ref,     # (T*Bp, I)  time-major flattened input
                    wih0_ref,  # (I, 4H)    layer-0 input weights,  gate order [f,i,g,o]
                    whh0_ref,  # (H, 4H)    layer-0 hidden weights
                    b0_ref,    # (1, 4H)    layer-0 combined bias
                    wih1_ref,  # (H, 4H)    layer-1 input weights
                    whh1_ref,  # (H, 4H)    layer-1 hidden weights
                    b1_ref,    # (1, 4H)    layer-1 combined bias
                    wfc_ref,   # (H, Op)    final linear weight (transposed, lane-padded)
                    bfc_ref,   # (1, Op)    final linear bias (lane-padded)
                    out_ref):  # (Bp, Op)
    Bp = out_ref.shape[0]
    T = x_ref.shape[0] // Bp
    H4 = b0_ref.shape[1]
    H = H4 // 4

    # Hoisted weight loads / bias broadcasts (JAX does not CSE broadcast_in_dim).
    whh0 = whh0_ref[...]
    wih1 = wih1_ref[...]
    whh1 = whh1_ref[...]
    b0 = jnp.broadcast_to(b0_ref[...], (Bp, H4))
    b1 = jnp.broadcast_to(b1_ref[...], (Bp, H4))

    # All T layer-0 input projections in one MXU call, off the serial recurrence.
    xproj = jnp.dot(x_ref[...], wih0_ref[...],
                    preferred_element_type=jnp.float32)        # (T*Bp, 4H)

    # Static lane mask selecting the "g" (cell candidate) block [2H, 3H).
    lane = lax.broadcasted_iota(jnp.int32, (Bp, H4), 1)
    g_mask = (lane >= 2 * H) & (lane < 3 * H)

    def activate(gates):
        # One full-width EUP pass: tanh(x) = 2*sigmoid(2x) - 1 on the g block,
        # plain sigmoid elsewhere; the scale/shift are cheap VPU ops.
        pre = jnp.where(g_mask, gates + gates, gates)
        s = jax.nn.sigmoid(pre)
        return jnp.where(g_mask, s + s - 1.0, s)

    def cell(gates, c):
        act = activate(gates)
        # Gate lane layout is [f | i | g | o]; f at offset 0 is aligned with the
        # offset-0 cell state, so f*c needs no lane relayout.
        f_g = act[:, 0 * H:1 * H]
        i_g = act[:, 1 * H:2 * H]
        g_g = act[:, 2 * H:3 * H]
        o_g = act[:, 3 * H:4 * H]
        # NOTE: i*g and o*tanh(c_new) still mix lane offsets; an explicit
        # pltpu.roll-based scheme could remove those relayouts but needs
        # bundle-level verification of the resulting layouts, so it is left out.
        c_new = f_g * c + i_g * g_g
        h_new = o_g * jnp.tanh(c_new)
        return h_new, c_new

    zeros = jnp.zeros((Bp, H), jnp.float32)
    h0, c0, h1, c1 = zeros, zeros, zeros, zeros

    # T is small & static -> full Python unroll; the LLO scheduler can overlap
    # layer-1 of step t with layer-0 of step t+1.
    for t in range(T):
        g0 = (xproj[t * Bp:(t + 1) * Bp, :]
              + jnp.dot(h0, whh0, preferred_element_type=jnp.float32) + b0)
        h0, c0 = cell(g0, c0)
        g1 = (jnp.dot(h0, wih1, preferred_element_type=jnp.float32)
              + jnp.dot(h1, whh1, preferred_element_type=jnp.float32) + b1)
        h1, c1 = cell(g1, c1)

    # output[:, -1, :] of the top layer == h1 after the last timestep.
    out = jnp.dot(h1, wfc_ref[...], preferred_element_type=jnp.float32) + bfc_ref[...]
    out_ref[...] = out.astype(out_ref.dtype)


def init_torch_params(key, input_size, hidden_size, output_dim):
    """PyTorch-layout parameters: uniform(-1/sqrt(H), 1/sqrt(H)), gate order (i,f,g,o)."""
    H = hidden_size
    bound = 1.0 / jnp.sqrt(jnp.float32(H))
    keys = jax.random.split(key, 10)

    def u(k, shape):
        return jax.random.uniform(k, shape, jnp.float32, -bound, bound)

    return {
        "wih0": u(keys[0], (4 * H, input_size)),   # weight_ih_l0
        "whh0": u(keys[1], (4 * H, H)),            # weight_hh_l0
        "bih0": u(keys[2], (4 * H,)),
        "bhh0": u(keys[3], (4 * H,)),
        "wih1": u(keys[4], (4 * H, H)),            # weight_ih_l1
        "whh1": u(keys[5], (4 * H, H)),            # weight_hh_l1
        "bih1": u(keys[6], (4 * H,)),
        "bhh1": u(keys[7], (4 * H,)),
        "wfc":  u(keys[8], (output_dim, H)),       # Linear weight
        "bfc":  u(keys[9], (output_dim,)),         # Linear bias
    }


def pack_params(tp, *, lane=128):
    """One-time conversion to the kernel layout (transposes, gate reorder [f,i,g,o],
    combined biases, FC lane padding) -- hoisted out of the per-call path."""
    H = tp["whh0"].shape[1]
    O = tp["wfc"].shape[0]
    Op = ((O + lane - 1) // lane) * lane

    def reorder(w):  # rows ordered (i, f, g, o) -> (f, i, g, o)
        i, f, g, o = jnp.split(w, 4, axis=0)
        return jnp.concatenate([f, i, g, o], axis=0)

    return {
        "wih0": reorder(tp["wih0"]).T,                       # (I, 4H)
        "whh0": reorder(tp["whh0"]).T,                       # (H, 4H)
        "b0":   reorder(tp["bih0"] + tp["bhh0"])[None, :],   # (1, 4H)
        "wih1": reorder(tp["wih1"]).T,                       # (H, 4H)
        "whh1": reorder(tp["whh1"]).T,                       # (H, 4H)
        "b1":   reorder(tp["bih1"] + tp["bhh1"])[None, :],   # (1, 4H)
        "wfc":  jnp.pad(tp["wfc"].T, ((0, 0), (0, Op - O))),           # (H, Op)
        "bfc":  jnp.pad(tp["bfc"][None, :], ((0, 0), (0, Op - O))),    # (1, Op)
    }


@functools.partial(jax.jit, static_argnames=("out_dim",))
def lstm_net_forward(x, kp, *, out_dim):
    """x: (B, T, I) float32, batch_first like the PyTorch module. Returns (B, out_dim)."""
    B, T, I = x.shape
    Op = kp["wfc"].shape[1]

    # Sublane-pad the batch (f32 sublane = 8); FC output is already lane-padded.
    Bp = max(8, ((B + 7) // 8) * 8)
    x_p = jnp.pad(x, ((0, Bp - B), (0, 0), (0, 0)))
    # Time-major flatten so every timestep is a static, sublane-aligned (Bp, I) slab
    # and the layer-0 input projection is one batched matmul inside the kernel.
    x_tm = jnp.transpose(x_p, (1, 0, 2)).reshape(T * Bp, I)

    vmem = pl.BlockSpec(memory_space=pltpu.MemorySpace.VMEM)
    args = (x_tm,
            kp["wih0"], kp["whh0"], kp["b0"],
            kp["wih1"], kp["whh1"], kp["b1"],
            kp["wfc"], kp["bfc"])

    # All resident data is << the default scoped-VMEM limit on v5e/v6e/v7x, so no
    # grid / tiling is needed at these shapes.
    # TODO(synk): for large batches on v7x, add grid=(Bp//TB,) over the batch with
    # dimension_semantics=("parallel",) to engage the second TensorCore; keep it
    # grid-less on single-TC v5e/v6e. If T grows, stream the lane-dense xproj
    # blocks over T rather than the lane-sparse raw input.
    out_p = pl.pallas_call(
        lstm_net_kernel,
        out_shape=jax.ShapeDtypeStruct((Bp, Op), jnp.float32),
        in_specs=[vmem] * len(args),
        out_specs=vmem,
    )(*args)

    return out_p[:B, :out_dim]


def lstm_net_reference(x, tp):
    """Pure-JAX reference mirroring nn.LSTM(num_layers=2, batch_first=True) + Linear."""
    B, T, _ = x.shape
    H = tp["whh0"].shape[1]

    def cell(x_in, h, c, wih, whh, bih, bhh):
        g = x_in @ wih.T + h @ whh.T + bih + bhh
        i = jax.nn.sigmoid(g[:, 0 * H:1 * H])
        f = jax.nn.sigmoid(g[:, 1 * H:2 * H])
        gg = jnp.tanh(g[:, 2 * H:3 * H])
        o = jax.nn.sigmoid(g[:, 3 * H:4 * H])
        c = f * c + i * gg
        h = o * jnp.tanh(c)
        return h, c

    h0 = c0 = h1 = c1 = jnp.zeros((B, H), jnp.float32)
    for t in range(T):
        h0, c0 = cell(x[:, t, :], h0, c0, tp["wih0"], tp["whh0"], tp["bih0"], tp["bhh0"])
        h1, c1 = cell(h0, h1, c1, tp["wih1"], tp["whh1"], tp["bih1"], tp["bhh1"])
    return h1 @ tp["wfc"].T + tp["bfc"]


if __name__ == "__main__":
    # Small shapes consistent with the module: batch=2, seq=8, input=16, hidden=32, out=10
    B, T, I, H, O = 2, 8, 16, 32, 10

    key = jax.random.PRNGKey(0)
    kx, kparam = jax.random.split(key)
    x = jax.random.normal(kx, (B, T, I), jnp.float32)

    torch_params = init_torch_params(kparam, I, H, O)
    kernel_params = pack_params(torch_params)   # one-time packing (hoisted out of forward)

    out = lstm_net_forward(x, kernel_params, out_dim=O)
    out = jax.block_until_ready(out)

    ref = lstm_net_reference(x, torch_params)
    assert out.shape == (B, O)
    # Tolerance allows for MXU (Mosaic) vs XLA default-precision f32 matmul pass
    # differences; structurally both sides compute identical split-gate math.
    assert jnp.allclose(out, ref, atol=1e-3, rtol=1e-3), "Pallas output mismatch vs reference"

    print("KERNEL_OK")
</pallas_src>

<mosaic_0001>
module attributes {stable_mosaic.version = 11 : i64} {
  func.func @lstm_net_kernel(%arg0: memref<64x16xf32, #tpu.memory_space<vmem>>, %arg1: memref<16x128xf32, #tpu.memory_space<vmem>>, %arg2: memref<32x128xf32, #tpu.memory_space<vmem>>, %arg3: memref<1x128xf32, #tpu.memory_space<vmem>>, %arg4: memref<32x128xf32, #tpu.memory_space<vmem>>, %arg5: memref<32x128xf32, #tpu.memory_space<vmem>>, %arg6: memref<1x128xf32, #tpu.memory_space<vmem>>, %arg7: memref<32x128xf32, #tpu.memory_space<vmem>>, %arg8: memref<1x128xf32, #tpu.memory_space<vmem>>, %arg9: memref<8x128xf32, #tpu.memory_space<vmem>>) attributes {dimension_semantics = [], scalar_prefetch = 0 : i64, scratch_operands = 0 : i64, tpu.core_type = #tpu.core_type<tc>} {
    %c0 = arith.constant 0 : index
    %c0_0 = arith.constant 0 : index
    %0 = vector.load %arg2[%c0, %c0_0] : memref<32x128xf32, #tpu.memory_space<vmem>>, vector<32x128xf32>
    %c0_1 = arith.constant 0 : index
    %c0_2 = arith.constant 0 : index
    %1 = vector.load %arg4[%c0_1, %c0_2] : memref<32x128xf32, #tpu.memory_space<vmem>>, vector<32x128xf32>
    %c0_3 = arith.constant 0 : index
    %c0_4 = arith.constant 0 : index
    %2 = vector.load %arg5[%c0_3, %c0_4] : memref<32x128xf32, #tpu.memory_space<vmem>>, vector<32x128xf32>
    %c0_5 = arith.constant 0 : index
    %c0_6 = arith.constant 0 : index
    %3 = vector.load %arg3[%c0_5, %c0_6] : memref<1x128xf32, #tpu.memory_space<vmem>>, vector<1x128xf32>
    %4 = vector.shape_cast %3 : vector<1x128xf32> to vector<1x128xf32>
    %5 = vector.broadcast %4 : vector<1x128xf32> to vector<8x128xf32>
    %c0_7 = arith.constant 0 : index
    %c0_8 = arith.constant 0 : index
    %6 = vector.load %arg6[%c0_7, %c0_8] : memref<1x128xf32, #tpu.memory_space<vmem>>, vector<1x128xf32>
    %7 = vector.shape_cast %6 : vector<1x128xf32> to vector<1x128xf32>
    %8 = vector.broadcast %7 : vector<1x128xf32> to vector<8x128xf32>
    %c0_9 = arith.constant 0 : index
    %c0_10 = arith.constant 0 : index
    %9 = vector.load %arg0[%c0_9, %c0_10] : memref<64x16xf32, #tpu.memory_space<vmem>>, vector<64x16xf32>
    %c0_11 = arith.constant 0 : index
    %c0_12 = arith.constant 0 : index
    %10 = vector.load %arg1[%c0_11, %c0_12] : memref<16x128xf32, #tpu.memory_space<vmem>>, vector<16x128xf32>
    %cst = arith.constant dense<0.000000e+00> : vector<64x128xf32>
    %11 = tpu.matmul %9, %10, %cst {dimension_numbers = #tpu.dot_dimension_numbers<[1], [0], [0], [1], [0, 0, 1, 1], [], []>} : vector<64x16xf32>, vector<16x128xf32>, vector<64x128xf32> -> vector<64x128xf32>
    %12 = tpu.iota {dimensions = array<i32: 1>} : vector<8x128xi32>
    %c64_i32 = arith.constant 64 : i32
    %13 = vector.broadcast %c64_i32 : i32 to vector<8x128xi32>
    %14 = arith.cmpi sge, %12, %13 : vector<8x128xi32>
    %c96_i32 = arith.constant 96 : i32
    %15 = vector.broadcast %c96_i32 : i32 to vector<8x128xi32>
    %16 = arith.cmpi slt, %12, %15 : vector<8x128xi32>
    %17 = arith.andi %14, %16 : vector<8x128xi1>
    %cst_13 = arith.constant 0.000000e+00 : f32
    %18 = vector.broadcast %cst_13 : f32 to vector<8x32xf32>
    %19 = vector.extract_strided_slice %11 {offsets = [0, 0], sizes = [8, 128], strides = [1, 1]} : vector<64x128xf32> to vector<8x128xf32>
    %cst_14 = arith.constant dense<0.000000e+00> : vector<8x128xf32>
    %20 = tpu.matmul %18, %0, %cst_14 {dimension_numbers = #tpu.dot_dimension_numbers<[1], [0], [0], [1], [0, 0, 1, 1], [], []>} : vector<8x32xf32>, vector<32x128xf32>, vector<8x128xf32> -> vector<8x128xf32>
    %21 = arith.addf %19, %20 : vector<8x128xf32>
    %22 = arith.addf %21, %5 : vector<8x128xf32>
    %23 = arith.addf %22, %22 : vector<8x128xf32>
    %24 = arith.select %17, %23, %22 : vector<8x128xi1>, vector<8x128xf32>
    %25 = arith.negf %24 : vector<8x128xf32>
    %26 = math.exp %25 : vector<8x128xf32>
    %cst_15 = arith.constant 1.000000e+00 : f32
    %27 = vector.broadcast %cst_15 : f32 to vector<8x128xf32>
    %28 = arith.addf %27, %26 : vector<8x128xf32>
    %29 = arith.divf %27, %28 : vector<8x128xf32>
    %30 = arith.addf %29, %29 : vector<8x128xf32>
    %cst_16 = arith.constant 1.000000e+00 : f32
    %31 = vector.broadcast %cst_16 : f32 to vector<8x128xf32>
    %32 = arith.subf %30, %31 : vector<8x128xf32>
    %33 = arith.select %17, %32, %29 : vector<8x128xi1>, vector<8x128xf32>
    %34 = vector.extract_strided_slice %33 {offsets = [0, 0], sizes = [8, 32], strides = [1, 1]} : vector<8x128xf32> to vector<8x32xf32>
    %35 = vector.extract_strided_slice %33 {offsets = [0, 32], sizes = [8, 32], strides = [1, 1]} : vector<8x128xf32> to vector<8x32xf32>
    %36 = vector.extract_strided_slice %33 {offsets = [0, 64], sizes = [8, 32], strides = [1, 1]} : vector<8x128xf32> to vector<8x32xf32>
    %37 = vector.extract_strided_slice %33 {offsets = [0, 96], sizes = [8, 32], strides = [1, 1]} : vector<8x128xf32> to vector<8x32xf32>
    %38 = arith.mulf %34, %18 : vector<8x32xf32>
    %39 = arith.mulf %35, %36 : vector<8x32xf32>
    %40 = arith.addf %38, %39 : vector<8x32xf32>
    %41 = math.tanh %40 : vector<8x32xf32>
    %42 = arith.mulf %37, %41 : vector<8x32xf32>
    %cst_17 = arith.constant dense<0.000000e+00> : vector<8x128xf32>
    %43 = tpu.matmul %42, %1, %cst_17 {dimension_numbers = #tpu.dot_dimension_numbers<[1], [0], [0], [1], [0, 0, 1, 1], [], []>} : vector<8x32xf32>, vector<32x128xf32>, vector<8x128xf32> -> vector<8x128xf32>
    %cst_18 = arith.constant dense<0.000000e+00> : vector<8x128xf32>
    %44 = tpu.matmul %18, %2, %cst_18 {dimension_numbers = #tpu.dot_dimension_numbers<[1], [0], [0], [1], [0, 0, 1, 1], [], []>} : vector<8x32xf32>, vector<32x128xf32>, vector<8x128xf32> -> vector<8x128xf32>
    %45 = arith.addf %43, %44 : vector<8x128xf32>
    %46 = arith.addf %45, %8 : vector<8x128xf32>
    %47 = arith.addf %46, %46 : vector<8x128xf32>
    %48 = arith.select %17, %47, %46 : vector<8x128xi1>, vector<8x128xf32>
    %49 = arith.negf %48 : vector<8x128xf32>
    %50 = math.exp %49 : vector<8x128xf32>
    %cst_19 = arith.constant 1.000000e+00 : f32
    %51 = vector.broadcast %cst_19 : f32 to vector<8x128xf32>
    %52 = arith.addf %51, %50 : vector<8x128xf32>
    %53 = arith.divf %51, %52 : vector<8x128xf32>
    %54 = arith.addf %53, %53 : vector<8x128xf32>
    %cst_20 = arith.constant 1.000000e+00 : f32
    %55 = vector.broadcast %cst_20 : f32 to vector<8x128xf32>
    %56 = arith.subf %54, %55 : vector<8x128xf32>
    %57 = arith.select %17, %56, %53 : vector<8x128xi1>, vector<8x128xf32>
    %58 = vector.extract_strided_slice %57 {offsets = [0, 0], sizes = [8, 32], strides = [1, 1]} : vector<8x128xf32> to vector<8x32xf32>
    %59 = vector.extract_strided_slice %57 {offsets = [0, 32], sizes = [8, 32], strides = [1, 1]} : vector<8x128xf32> to vector<8x32xf32>
    %60 = vector.extract_strided_slice %57 {offsets = [0, 64], sizes = [8, 32], strides = [1, 1]} : vector<8x128xf32> to vector<8x32xf32>
    %61 = vector.extract_strided_slice %57 {offsets = [0, 96], sizes = [8, 32], strides = [1, 1]} : vector<8x128xf32> to vector<8x32xf32>
    %62 = arith.mulf %58, %18 : vector<8x32xf32>
    %63 = arith.mulf %59, %60 : vector<8x32xf32>
    %64 = arith.addf %62, %63 : vector<8x32xf32>
    %65 = math.tanh %64 : vector<8x32xf32>
    %66 = arith.mulf %61, %65 : vector<8x32xf32>
    %67 = vector.extract_strided_slice %11 {offsets = [8, 0], sizes = [8, 128], strides = [1, 1]} : vector<64x128xf32> to vector<8x128xf32>
    %cst_21 = arith.constant dense<0.000000e+00> : vector<8x128xf32>
    %68 = tpu.matmul %42, %0, %cst_21 {dimension_numbers = #tpu.dot_dimension_numbers<[1], [0], [0], [1], [0, 0, 1, 1], [], []>} : vector<8x32xf32>, vector<32x128xf32>, vector<8x128xf32> -> vector<8x128xf32>
    %69 = arith.addf %67, %68 : vector<8x128xf32>
    %70 = arith.addf %69, %5 : vector<8x128xf32>
    %71 = arith.addf %70, %70 : vector<8x128xf32>
    %72 = arith.select %17, %71, %70 : vector<8x128xi1>, vector<8x128xf32>
    %73 = arith.negf %72 : vector<8x128xf32>
    %74 = math.exp %73 : vector<8x128xf32>
    %cst_22 = arith.constant 1.000000e+00 : f32
    %75 = vector.broadcast %cst_22 : f32 to vector<8x128xf32>
    %76 = arith.addf %75, %74 : vector<8x128xf32>
    %77 = arith.divf %75, %76 : vector<8x128xf32>
    %78 = arith.addf %77, %77 : vector<8x128xf32>
    %cst_23 = arith.constant 1.000000e+00 : f32
    %79 = vector.broadcast %cst_23 : f32 to vector<8x128xf32>
    %80 = arith.subf %78, %79 : vector<8x128xf32>
    %81 = arith.select %17, %80, %77 : vector<8x128xi1>, vector<8x128xf32>
    %82 = vector.extract_strided_slice %81 {offsets = [0, 0], sizes = [8, 32], strides = [1, 1]} : vector<8x128xf32> to vector<8x32xf32>
    %83 = vector.extract_strided_slice %81 {offsets = [0, 32], sizes = [8, 32], strides = [1, 1]} : vector<8x128xf32> to vector<8x32xf32>
    %84 = vector.extract_strided_slice %81 {offsets = [0, 64], sizes = [8, 32], strides = [1, 1]} : vector<8x128xf32> to vector<8x32xf32>
    %85 = vector.extract_strided_slice %81 {offsets = [0, 96], sizes = [8, 32], strides = [1, 1]} : vector<8x128xf32> to vector<8x32xf32>
    %86 = arith.mulf %82, %40 : vector<8x32xf32>
    %87 = arith.mulf %83, %84 : vector<8x32xf32>
    %88 = arith.addf %86, %87 : vector<8x32xf32>
    %89 = math.tanh %88 : vector<8x32xf32>
    %90 = arith.mulf %85, %89 : vector<8x32xf32>
    %cst_24 = arith.constant dense<0.000000e+00> : vector<8x128xf32>
    %91 = tpu.matmul %90, %1, %cst_24 {dimension_numbers = #tpu.dot_dimension_numbers<[1], [0], [0], [1], [0, 0, 1, 1], [], []>} : vector<8x32xf32>, vector<32x128xf32>, vector<8x128xf32> -> vector<8x128xf32>
    %cst_25 = arith.constant dense<0.000000e+00> : vector<8x128xf32>
    %92 = tpu.matmul %66, %2, %cst_25 {dimension_numbers = #tpu.dot_dimension_numbers<[1], [0], [0], [1], [0, 0, 1, 1], [], []>} : vector<8x32xf32>, vector<32x128xf32>, vector<8x128xf32> -> vector<8x128xf32>
    %93 = arith.addf %91, %92 : vector<8x128xf32>
    %94 = arith.addf %93, %8 : vector<8x128xf32>
    %95 = arith.addf %94, %94 : vector<8x128xf32>
    %96 = arith.select %17, %95, %94 : vector<8x128xi1>, vector<8x128xf32>
    %97 = arith.negf %96 : vector<8x128xf32>
    %98 = math.exp %97 : vector<8x128xf32>
    %cst_26 = arith.constant 1.000000e+00 : f32
    %99 = vector.broadcast %cst_26 : f32 to vector<8x128xf32>
    %100 = arith.addf %99, %98 : vector<8x128xf32>
    %101 = arith.divf %99, %100 : vector<8x128xf32>
    %102 = arith.addf %101, %101 : vector<8x128xf32>
    %cst_27 = arith.constant 1.000000e+00 : f32
    %103 = vector.broadcast %cst_27 : f32 to vector<8x128xf32>
    %104 = arith.subf %102, %103 : vector<8x128xf32>
    %105 = arith.select %17, %104, %101 : vector<8x128xi1>, vector<8x128xf32>
    %106 = vector.extract_strided_slice %105 {offsets = [0, 0], sizes = [8, 32], strides = [1, 1]} : vector<8x128xf32> to vector<8x32xf32>
    %107 = vector.extract_strided_slice %105 {offsets = [0, 32], sizes = [8, 32], strides = [1, 1]} : vector<8x128xf32> to vector<8x32xf32>
    %108 = vector.extract_strided_slice %105 {offsets = [0, 64], sizes = [8, 32], strides = [1, 1]} : vector<8x128xf32> to vector<8x32xf32>
    %109 = vector.extract_strided_slice %105 {offsets = [0, 96], sizes = [8, 32], strides = [1, 1]} : vector<8x128xf32> to vector<8x32xf32>
    %110 = arith.mulf %106, %64 : vector<8x32xf32>
    %111 = arith.mulf %107, %108 : vector<8x32xf32>
    %112 = arith.addf %110, %111 : vector<8x32xf32>
    %113 = math.tanh %112 : vector<8x32xf32>
    %114 = arith.mulf %109, %113 : vector<8x32xf32>
    %115 = vector.extract_strided_slice %11 {offsets = [16, 0], sizes = [8, 128], strides = [1, 1]} : vector<64x128xf32> to vector<8x128xf32>
    %cst_28 = arith.constant dense<0.000000e+00> : vector<8x128xf32>
    %116 = tpu.matmul %90, %0, %cst_28 {dimension_numbers = #tpu.dot_dimension_numbers<[1], [0], [0], [1], [0, 0, 1, 1], [], []>} : vector<8x32xf32>, vector<32x128xf32>, vector<8x128xf32> -> vector<8x128xf32>
    %117 = arith.addf %115, %116 : vector<8x128xf32>
    %118 = arith.addf %117, %5 : vector<8x128xf32>
    %119 = arith.addf %118, %118 : vector<8x128xf32>
    %120 = arith.select %17, %119, %118 : vector<8x128xi1>, vector<8x128xf32>
    %121 = arith.negf %120 : vector<8x128xf32>
    %122 = math.exp %121 : vector<8x128xf32>
    %cst_29 = arith.constant 1.000000e+00 : f32
    %123 = vector.broadcast %cst_29 : f32 to vector<8x128xf32>
    %124 = arith.addf %123, %122 : vector<8x128xf32>
    %125 = arith.divf %123, %124 : vector<8x128xf32>
    %126 = arith.addf %125, %125 : vector<8x128xf32>
    %cst_30 = arith.constant 1.000000e+00 : f32
    %127 = vector.broadcast %cst_30 : f32 to vector<8x128xf32>
    %128 = arith.subf %126, %127 : vector<8x128xf32>
    %129 = arith.select %17, %128, %125 : vector<8x128xi1>, vector<8x128xf32>
    %130 = vector.extract_strided_slice %129 {offsets = [0, 0], sizes = [8, 32], strides = [1, 1]} : vector<8x128xf32> to vector<8x32xf32>
    %131 = vector.extract_strided_slice %129 {offsets = [0, 32], sizes = [8, 32], strides = [1, 1]} : vector<8x128xf32> to vector<8x32xf32>
    %132 = vector.extract_strided_slice %129 {offsets = [0, 64], sizes = [8, 32], strides = [1, 1]} : vector<8x128xf32> to vector<8x32xf32>
    %133 = vector.extract_strided_slice %129 {offsets = [0, 96], sizes = [8, 32], strides = [1, 1]} : vector<8x128xf32> to vector<8x32xf32>
    %134 = arith.mulf %130, %88 : vector<8x32xf32>
    %135 = arith.mulf %131, %132 : vector<8x32xf32>
    %136 = arith.addf %134, %135 : vector<8x32xf32>
    %137 = math.tanh %136 : vector<8x32xf32>
    %138 = arith.mulf %133, %137 : vector<8x32xf32>
    %cst_31 = arith.constant dense<0.000000e+00> : vector<8x128xf32>
    %139 = tpu.matmul %138, %1, %cst_31 {dimension_numbers = #tpu.dot_dimension_numbers<[1], [0], [0], [1], [0, 0, 1, 1], [], []>} : vector<8x32xf32>, vector<32x128xf32>, vector<8x128xf32> -> vector<8x128xf32>
    %cst_32 = arith.constant dense<0.000000e+00> : vector<8x128xf32>
    %140 = tpu.matmul %114, %2, %cst_32 {dimension_numbers = #tpu.dot_dimension_numbers<[1], [0], [0], [1], [0, 0, 1, 1], [], []>} : vector<8x32xf32>, vector<32x128xf32>, vector<8x128xf32> -> vector<8x128xf32>
    %141 = arith.addf %139, %140 : vector<8x128xf32>
    %142 = arith.addf %141, %8 : vector<8x128xf32>
    %143 = arith.addf %142, %142 : vector<8x128xf32>
    %144 = arith.select %17, %143, %142 : vector<8x128xi1>, vector<8x128xf32>
    %145 = arith.negf %144 : vector<8x128xf32>
    %146 = math.exp %145 : vector<8x128xf32>
    %cst_33 = arith.constant 1.000000e+00 : f32
    %147 = vector.broadcast %cst_33 : f32 to vector<8x128xf32>
    %148 = arith.addf %147, %146 : vector<8x128xf32>
    %149 = arith.divf %147, %148 : vector<8x128xf32>
    %150 = arith.addf %149, %149 : vector<8x128xf32>
    %cst_34 = arith.constant 1.000000e+00 : f32
    %151 = vector.broadcast %cst_34 : f32 to vector<8x128xf32>
    %152 = arith.subf %150, %151 : vector<8x128xf32>
    %153 = arith.select %17, %152, %149 : vector<8x128xi1>, vector<8x128xf32>
    %154 = vector.extract_strided_slice %153 {offsets = [0, 0], sizes = [8, 32], strides = [1, 1]} : vector<8x128xf32> to vector<8x32xf32>
    %155 = vector.extract_strided_slice %153 {offsets = [0, 32], sizes = [8, 32], strides = [1, 1]} : vector<8x128xf32> to vector<8x32xf32>
    %156 = vector.extract_strided_slice %153 {offsets = [0, 64], sizes = [8, 32], strides = [1, 1]} : vector<8x128xf32> to vector<8x32xf32>
    %157 = vector.extract_strided_slice %153 {offsets = [0, 96], sizes = [8, 32], strides = [1, 1]} : vector<8x128xf32> to vector<8x32xf32>
    %158 = arith.mulf %154, %112 : vector<8x32xf32>
    %159 = arith.mulf %155, %156 : vector<8x32xf32>
    %160 = arith.addf %158, %159 : vector<8x32xf32>
    %161 = math.tanh %160 : vector<8x32xf32>
    %162 = arith.mulf %157, %161 : vector<8x32xf32>
    %163 = vector.extract_strided_slice %11 {offsets = [24, 0], sizes = [8, 128], strides = [1, 1]} : vector<64x128xf32> to vector<8x128xf32>
    %cst_35 = arith.constant dense<0.000000e+00> : vector<8x128xf32>
    %164 = tpu.matmul %138, %0, %cst_35 {dimension_numbers = #tpu.dot_dimension_numbers<[1], [0], [0], [1], [0, 0, 1, 1], [], []>} : vector<8x32xf32>, vector<32x128xf32>, vector<8x128xf32> -> vector<8x128xf32>
    %165 = arith.addf %163, %164 : vector<8x128xf32>
    %166 = arith.addf %165, %5 : vector<8x128xf32>
    %167 = arith.addf %166, %166 : vector<8x128xf32>
    %168 = arith.select %17, %167, %166 : vector<8x128xi1>, vector<8x128xf32>
    %169 = arith.negf %168 : vector<8x128xf32>
    %170 = math.exp %169 : vector<8x128xf32>
    %cst_36 = arith.constant 1.000000e+00 : f32
    %171 = vector.broadcast %cst_36 : f32 to vector<8x128xf32>
    %172 = arith.addf %171, %170 : vector<8x128xf32>
    %173 = arith.divf %171, %172 : vector<8x128xf32>
    %174 = arith.addf %173, %173 : vector<8x128xf32>
    %cst_37 = arith.constant 1.000000e+00 : f32
    %175 = vector.broadcast %cst_37 : f32 to vector<8x128xf32>
    %176 = arith.subf %174, %175 : vector<8x128xf32>
    %177 = arith.select %17, %176, %173 : vector<8x128xi1>, vector<8x128xf32>
    %178 = vector.extract_strided_slice %177 {offsets = [0, 0], sizes = [8, 32], strides = [1, 1]} : vector<8x128xf32> to vector<8x32xf32>
    %179 = vector.extract_strided_slice %177 {offsets = [0, 32], sizes = [8, 32], strides = [1, 1]} : vector<8x128xf32> to vector<8x32xf32>
    %180 = vector.extract_strided_slice %177 {offsets = [0, 64], sizes = [8, 32], strides = [1, 1]} : vector<8x128xf32> to vector<8x32xf32>
    %181 = vector.extract_strided_slice %177 {offsets = [0, 96], sizes = [8, 32], strides = [1, 1]} : vector<8x128xf32> to vector<8x32xf32>
    %182 = arith.mulf %178, %136 : vector<8x32xf32>
    %183 = arith.mulf %179, %180 : vector<8x32xf32>
    %184 = arith.addf %182, %183 : vector<8x32xf32>
    %185 = math.tanh %184 : vector<8x32xf32>
    %186 = arith.mulf %181, %185 : vector<8x32xf32>
    %cst_38 = arith.constant dense<0.000000e+00> : vector<8x128xf32>
    %187 = tpu.matmul %186, %1, %cst_38 {dimension_numbers = #tpu.dot_dimension_numbers<[1], [0], [0], [1], [0, 0, 1, 1], [], []>} : vector<8x32xf32>, vector<32x128xf32>, vector<8x128xf32> -> vector<8x128xf32>
    %cst_39 = arith.constant dense<0.000000e+00> : vector<8x128xf32>
    %188 = tpu.matmul %162, %2, %cst_39 {dimension_numbers = #tpu.dot_dimension_numbers<[1], [0], [0], [1], [0, 0, 1, 1], [], []>} : vector<8x32xf32>, vector<32x128xf32>, vector<8x128xf32> -> vector<8x128xf32>
    %189 = arith.addf %187, %188 : vector<8x128xf32>
    %190 = arith.addf %189, %8 : vector<8x128xf32>
    %191 = arith.addf %190, %190 : vector<8x128xf32>
    %192 = arith.select %17, %191, %190 : vector<8x128xi1>, vector<8x128xf32>
    %193 = arith.negf %192 : vector<8x128xf32>
    %194 = math.exp %193 : vector<8x128xf32>
    %cst_40 = arith.constant 1.000000e+00 : f32
    %195 = vector.broadcast %cst_40 : f32 to vector<8x128xf32>
    %196 = arith.addf %195, %194 : vector<8x128xf32>
    %197 = arith.divf %195, %196 : vector<8x128xf32>
    %198 = arith.addf %197, %197 : vector<8x128xf32>
    %cst_41 = arith.constant 1.000000e+00 : f32
    %199 = vector.broadcast %cst_41 : f32 to vector<8x128xf32>
    %200 = arith.subf %198, %199 : vector<8x128xf32>
    %201 = arith.select %17, %200, %197 : vector<8x128xi1>, vector<8x128xf32>
    %202 = vector.extract_strided_slice %201 {offsets = [0, 0], sizes = [8, 32], strides = [1, 1]} : vector<8x128xf32> to vector<8x32xf32>
    %203 = vector.extract_strided_slice %201 {offsets = [0, 32], sizes = [8, 32], strides = [1, 1]} : vector<8x128xf32> to vector<8x32xf32>
    %204 = vector.extract_strided_slice %201 {offsets = [0, 64], sizes = [8, 32], strides = [1, 1]} : vector<8x128xf32> to vector<8x32xf32>
    %205 = vector.extract_strided_slice %201 {offsets = [0, 96], sizes = [8, 32], strides = [1, 1]} : vector<8x128xf32> to vector<8x32xf32>
    %206 = arith.mulf %202, %160 : vector<8x32xf32>
    %207 = arith.mulf %203, %204 : vector<8x32xf32>
    %208 = arith.addf %206, %207 : vector<8x32xf32>
    %209 = math.tanh %208 : vector<8x32xf32>
    %210 = arith.mulf %205, %209 : vector<8x32xf32>
    %211 = vector.extract_strided_slice %11 {offsets = [32, 0], sizes = [8, 128], strides = [1, 1]} : vector<64x128xf32> to vector<8x128xf32>
    %cst_42 = arith.constant dense<0.000000e+00> : vector<8x128xf32>
    %212 = tpu.matmul %186, %0, %cst_42 {dimension_numbers = #tpu.dot_dimension_numbers<[1], [0], [0], [1], [0, 0, 1, 1], [], []>} : vector<8x32xf32>, vector<32x128xf32>, vector<8x128xf32> -> vector<8x128xf32>
    %213 = arith.addf %211, %212 : vector<8x128xf32>
    %214 = arith.addf %213, %5 : vector<8x128xf32>
    %215 = arith.addf %214, %214 : vector<8x128xf32>
    %216 = arith.select %17, %215, %214 : vector<8x128xi1>, vector<8x128xf32>
    %217 = arith.negf %216 : vector<8x128xf32>
    %218 = math.exp %217 : vector<8x128xf32>
    %cst_43 = arith.constant 1.000000e+00 : f32
    %219 = vector.broadcast %cst_43 : f32 to vector<8x128xf32>
    %220 = arith.addf %219, %218 : vector<8x128xf32>
    %221 = arith.divf %219, %220 : vector<8x128xf32>
    %222 = arith.addf %221, %221 : vector<8x128xf32>
    %cst_44 = arith.constant 1.000000e+00 : f32
    %223 = vector.broadcast %cst_44 : f32 to vector<8x128xf32>
    %224 = arith.subf %222, %223 : vector<8x128xf32>
    %225 = arith.select %17, %224, %221 : vector<8x128xi1>, vector<8x128xf32>
    %226 = vector.extract_strided_slice %225 {offsets = [0, 0], sizes = [8, 32], strides = [1, 1]} : vector<8x128xf32> to vector<8x32xf32>
    %227 = vector.extract_strided_slice %225 {offsets = [0, 32], sizes = [8, 32], strides = [1, 1]} : vector<8x128xf32> to vector<8x32xf32>
    %228 = vector.extract_strided_slice %225 {offsets = [0, 64], sizes = [8, 32], strides = [1, 1]} : vector<8x128xf32> to vector<8x32xf32>
    %229 = vector.extract_strided_slice %225 {offsets = [0, 96], sizes = [8, 32], strides = [1, 1]} : vector<8x128xf32> to vector<8x32xf32>
    %230 = arith.mulf %226, %184 : vector<8x32xf32>
    %231 = arith.mulf %227, %228 : vector<8x32xf32>
    %232 = arith.addf %230, %231 : vector<8x32xf32>
    %233 = math.tanh %232 : vector<8x32xf32>
    %234 = arith.mulf %229, %233 : vector<8x32xf32>
    %cst_45 = arith.constant dense<0.000000e+00> : vector<8x128xf32>
    %235 = tpu.matmul %234, %1, %cst_45 {dimension_numbers = #tpu.dot_dimension_numbers<[1], [0], [0], [1], [0, 0, 1, 1], [], []>} : vector<8x32xf32>, vector<32x128xf32>, vector<8x128xf32> -> vector<8x128xf32>
    %cst_46 = arith.constant dense<0.000000e+00> : vector<8x128xf32>
    %236 = tpu.matmul %210, %2, %cst_46 {dimension_numbers = #tpu.dot_dimension_numbers<[1], [0], [0], [1], [0, 0, 1, 1], [], []>} : vector<8x32xf32>, vector<32x128xf32>, vector<8x128xf32> -> vector<8x128xf32>
    %237 = arith.addf %235, %236 : vector<8x128xf32>
    %238 = arith.addf %237, %8 : vector<8x128xf32>
    %239 = arith.addf %238, %238 : vector<8x128xf32>
    %240 = arith.select %17, %239, %238 : vector<8x128xi1>, vector<8x128xf32>
    %241 = arith.negf %240 : vector<8x128xf32>
    %242 = math.exp %241 : vector<8x128xf32>
    %cst_47 = arith.constant 1.000000e+00 : f32
    %243 = vector.broadcast %cst_47 : f32 to vector<8x128xf32>
    %244 = arith.addf %243, %242 : vector<8x128xf32>
    %245 = arith.divf %243, %244 : vector<8x128xf32>
    %246 = arith.addf %245, %245 : vector<8x128xf32>
    %cst_48 = arith.constant 1.000000e+00 : f32
    %247 = vector.broadcast %cst_48 : f32 to vector<8x128xf32>
    %248 = arith.subf %246, %247 : vector<8x128xf32>
    %249 = arith.select %17, %248, %245 : vector<8x128xi1>, vector<8x128xf32>
    %250 = vector.extract_strided_slice %249 {offsets = [0, 0], sizes = [8, 32], strides = [1, 1]} : vector<8x128xf32> to vector<8x32xf32>
    %251 = vector.extract_strided_slice %249 {offsets = [0, 32], sizes = [8, 32], strides = [1, 1]} : vector<8x128xf32> to vector<8x32xf32>
    %252 = vector.extract_strided_slice %249 {offsets = [0, 64], sizes = [8, 32], strides = [1, 1]} : vector<8x128xf32> to vector<8x32xf32>
    %253 = vector.extract_strided_slice %249 {offsets = [0, 96], sizes = [8, 32], strides = [1, 1]} : vector<8x128xf32> to vector<8x32xf32>
    %254 = arith.mulf %250, %208 : vector<8x32xf32>
    %255 = arith.mulf %251, %252 : vector<8x32xf32>
    %256 = arith.addf %254, %255 : vector<8x32xf32>
    %257 = math.tanh %256 : vector<8x32xf32>
    %258 = arith.mulf %253, %257 : vector<8x32xf32>
    %259 = vector.extract_strided_slice %11 {offsets = [40, 0], sizes = [8, 128], strides = [1, 1]} : vector<64x128xf32> to vector<8x128xf32>
    %cst_49 = arith.constant dense<0.000000e+00> : vector<8x128xf32>
    %260 = tpu.matmul %234, %0, %cst_49 {dimension_numbers = #tpu.dot_dimension_numbers<[1], [0], [0], [1], [0, 0, 1, 1], [], []>} : vector<8x32xf32>, vector<32x128xf32>, vector<8x128xf32> -> vector<8x128xf32>
    %261 = arith.addf %259, %260 : vector<8x128xf32>
    %262 = arith.addf %261, %5 : vector<8x128xf32>
    %263 = arith.addf %262, %262 : vector<8x128xf32>
    %264 = arith.select %17, %263, %262 : vector<8x128xi1>, vector<8x128xf32>
    %265 = arith.negf %264 : vector<8x128xf32>
    %266 = math.exp %265 : vector<8x128xf32>
    %cst_50 = arith.constant 1.000000e+00 : f32
    %267 = vector.broadcast %cst_50 : f32 to vector<8x128xf32>
    %268 = arith.addf %267, %266 : vector<8x128xf32>
    %269 = arith.divf %267, %268 : vector<8x128xf32>
    %270 = arith.addf %269, %269 : vector<8x128xf32>
    %cst_51 = arith.constant 1.000000e+00 : f32
    %271 = vector.broadcast %cst_51 : f32 to vector<8x128xf32>
    %272 = arith.subf %270, %271 : vector<8x128xf32>
    %273 = arith.select %17, %272, %269 : vector<8x128xi1>, vector<8x128xf32>
    %274 = vector.extract_strided_slice %273 {offsets = [0, 0], sizes = [8, 32], strides = [1, 1]} : vector<8x128xf32> to vector<8x32xf32>
    %275 = vector.extract_strided_slice %273 {offsets = [0, 32], sizes = [8, 32], strides = [1, 1]} : vector<8x128xf32> to vector<8x32xf32>
    %276 = vector.extract_strided_slice %273 {offsets = [0, 64], sizes = [8, 32], strides = [1, 1]} : vector<8x128xf32> to vector<8x32xf32>
    %277 = vector.extract_strided_slice %273 {offsets = [0, 96], sizes = [8, 32], strides = [1, 1]} : vector<8x128xf32> to vector<8x32xf32>
    %278 = arith.mulf %274, %232 : vector<8x32xf32>
    %279 = arith.mulf %275, %276 : vector<8x32xf32>
    %280 = arith.addf %278, %279 : vector<8x32xf32>
    %281 = math.tanh %280 : vector<8x32xf32>
    %282 = arith.mulf %277, %281 : vector<8x32xf32>
    %cst_52 = arith.constant dense<0.000000e+00> : vector<8x128xf32>
    %283 = tpu.matmul %282, %1, %cst_52 {dimension_numbers = #tpu.dot_dimension_numbers<[1], [0], [0], [1], [0, 0, 1, 1], [], []>} : vector<8x32xf32>, vector<32x128xf32>, vector<8x128xf32> -> vector<8x128xf32>
    %cst_53 = arith.constant dense<0.000000e+00> : vector<8x128xf32>
    %284 = tpu.matmul %258, %2, %cst_53 {dimension_numbers = #tpu.dot_dimension_numbers<[1], [0], [0], [1], [0, 0, 1, 1], [], []>} : vector<8x32xf32>, vector<32x128xf32>, vector<8x128xf32> -> vector<8x128xf32>
    %285 = arith.addf %283, %284 : vector<8x128xf32>
    %286 = arith.addf %285, %8 : vector<8x128xf32>
    %287 = arith.addf %286, %286 : vector<8x128xf32>
    %288 = arith.select %17, %287, %286 : vector<8x128xi1>, vector<8x128xf32>
    %289 = arith.negf %288 : vector<8x128xf32>
    %290 = math.exp %289 : vector<8x128xf32>
    %cst_54 = arith.constant 1.000000e+00 : f32
    %291 = vector.broadcast %cst_54 : f32 to vector<8x128xf32>
    %292 = arith.addf %291, %290 : vector<8x128xf32>
    %293 = arith.divf %291, %292 : vector<8x128xf32>
    %294 = arith.addf %293, %293 : vector<8x128xf32>
    %cst_55 = arith.constant 1.000000e+00 : f32
    %295 = vector.broadcast %cst_55 : f32 to vector<8x128xf32>
    %296 = arith.subf %294, %295 : vector<8x128xf32>
    %297 = arith.select %17, %296, %293 : vector<8x128xi1>, vector<8x128xf32>
    %298 = vector.extract_strided_slice %297 {offsets = [0, 0], sizes = [8, 32], strides = [1, 1]} : vector<8x128xf32> to vector<8x32xf32>
    %299 = vector.extract_strided_slice %297 {offsets = [0, 32], sizes = [8, 32], strides = [1, 1]} : vector<8x128xf32> to vector<8x32xf32>
    %300 = vector.extract_strided_slice %297 {offsets = [0, 64], sizes = [8, 32], strides = [1, 1]} : vector<8x128xf32> to vector<8x32xf32>
    %301 = vector.extract_strided_slice %297 {offsets = [0, 96], sizes = [8, 32], strides = [1, 1]} : vector<8x128xf32> to vector<8x32xf32>
    %302 = arith.mulf %298, %256 : vector<8x32xf32>
    %303 = arith.mulf %299, %300 : vector<8x32xf32>
    %304 = arith.addf %302, %303 : vector<8x32xf32>
    %305 = math.tanh %304 : vector<8x32xf32>
    %306 = arith.mulf %301, %305 : vector<8x32xf32>
    %307 = vector.extract_strided_slice %11 {offsets = [48, 0], sizes = [8, 128], strides = [1, 1]} : vector<64x128xf32> to vector<8x128xf32>
    %cst_56 = arith.constant dense<0.000000e+00> : vector<8x128xf32>
    %308 = tpu.matmul %282, %0, %cst_56 {dimension_numbers = #tpu.dot_dimension_numbers<[1], [0], [0], [1], [0, 0, 1, 1], [], []>} : vector<8x32xf32>, vector<32x128xf32>, vector<8x128xf32> -> vector<8x128xf32>
    %309 = arith.addf %307, %308 : vector<8x128xf32>
    %310 = arith.addf %309, %5 : vector<8x128xf32>
    %311 = arith.addf %310, %310 : vector<8x128xf32>
    %312 = arith.select %17, %311, %310 : vector<8x128xi1>, vector<8x128xf32>
    %313 = arith.negf %312 : vector<8x128xf32>
    %314 = math.exp %313 : vector<8x128xf32>
    %cst_57 = arith.constant 1.000000e+00 : f32
    %315 = vector.broadcast %cst_57 : f32 to vector<8x128xf32>
    %316 = arith.addf %315, %314 : vector<8x128xf32>
    %317 = arith.divf %315, %316 : vector<8x128xf32>
    %318 = arith.addf %317, %317 : vector<8x128xf32>
    %cst_58 = arith.constant 1.000000e+00 : f32
    %319 = vector.broadcast %cst_58 : f32 to vector<8x128xf32>
    %320 = arith.subf %318, %319 : vector<8x128xf32>
    %321 = arith.select %17, %320, %317 : vector<8x128xi1>, vector<8x128xf32>
    %322 = vector.extract_strided_slice %321 {offsets = [0, 0], sizes = [8, 32], strides = [1, 1]} : vector<8x128xf32> to vector<8x32xf32>
    %323 = vector.extract_strided_slice %321 {offsets = [0, 32], sizes = [8, 32], strides = [1, 1]} : vector<8x128xf32> to vector<8x32xf32>
    %324 = vector.extract_strided_slice %321 {offsets = [0, 64], sizes = [8, 32], strides = [1, 1]} : vector<8x128xf32> to vector<8x32xf32>
    %325 = vector.extract_strided_slice %321 {offsets = [0, 96], sizes = [8, 32], strides = [1, 1]} : vector<8x128xf32> to vector<8x32xf32>
    %326 = arith.mulf %322, %280 : vector<8x32xf32>
    %327 = arith.mulf %323, %324 : vector<8x32xf32>
    %328 = arith.addf %326, %327 : vector<8x32xf32>
    %329 = math.tanh %328 : vector<8x32xf32>
    %330 = arith.mulf %325, %329 : vector<8x32xf32>
    %cst_59 = arith.constant dense<0.000000e+00> : vector<8x128xf32>
    %331 = tpu.matmul %330, %1, %cst_59 {dimension_numbers = #tpu.dot_dimension_numbers<[1], [0], [0], [1], [0, 0, 1, 1], [], []>} : vector<8x32xf32>, vector<32x128xf32>, vector<8x128xf32> -> vector<8x128xf32>
    %cst_60 = arith.constant dense<0.000000e+00> : vector<8x128xf32>
    %332 = tpu.matmul %306, %2, %cst_60 {dimension_numbers = #tpu.dot_dimension_numbers<[1], [0], [0], [1], [0, 0, 1, 1], [], []>} : vector<8x32xf32>, vector<32x128xf32>, vector<8x128xf32> -> vector<8x128xf32>
    %333 = arith.addf %331, %332 : vector<8x128xf32>
    %334 = arith.addf %333, %8 : vector<8x128xf32>
    %335 = arith.addf %334, %334 : vector<8x128xf32>
    %336 = arith.select %17, %335, %334 : vector<8x128xi1>, vector<8x128xf32>
    %337 = arith.negf %336 : vector<8x128xf32>
    %338 = math.exp %337 : vector<8x128xf32>
    %cst_61 = arith.constant 1.000000e+00 : f32
    %339 = vector.broadcast %cst_61 : f32 to vector<8x128xf32>
    %340 = arith.addf %339, %338 : vector<8x128xf32>
    %341 = arith.divf %339, %340 : vector<8x128xf32>
    %342 = arith.addf %341, %341 : vector<8x128xf32>
    %cst_62 = arith.constant 1.000000e+00 : f32
    %343 = vector.broadcast %cst_62 : f32 to vector<8x128xf32>
    %344 = arith.subf %342, %343 : vector<8x128xf32>
    %345 = arith.select %17, %344, %341 : vector<8x128xi1>, vector<8x128xf32>
    %346 = vector.extract_strided_slice %345 {offsets = [0, 0], sizes = [8, 32], strides = [1, 1]} : vector<8x128xf32> to vector<8x32xf32>
    %347 = vector.extract_strided_slice %345 {offsets = [0, 32], sizes = [8, 32], strides = [1, 1]} : vector<8x128xf32> to vector<8x32xf32>
    %348 = vector.extract_strided_slice %345 {offsets = [0, 64], sizes = [8, 32], strides = [1, 1]} : vector<8x128xf32> to vector<8x32xf32>
    %349 = vector.extract_strided_slice %345 {offsets = [0, 96], sizes = [8, 32], strides = [1, 1]} : vector<8x128xf32> to vector<8x32xf32>
    %350 = arith.mulf %346, %304 : vector<8x32xf32>
    %351 = arith.mulf %347, %348 : vector<8x32xf32>
    %352 = arith.addf %350, %351 : vector<8x32xf32>
    %353 = math.tanh %352 : vector<8x32xf32>
    %354 = arith.mulf %349, %353 : vector<8x32xf32>
    %355 = vector.extract_strided_slice %11 {offsets = [56, 0], sizes = [8, 128], strides = [1, 1]} : vector<64x128xf32> to vector<8x128xf32>
    %cst_63 = arith.constant dense<0.000000e+00> : vector<8x128xf32>
    %356 = tpu.matmul %330, %0, %cst_63 {dimension_numbers = #tpu.dot_dimension_numbers<[1], [0], [0], [1], [0, 0, 1, 1], [], []>} : vector<8x32xf32>, vector<32x128xf32>, vector<8x128xf32> -> vector<8x128xf32>
    %357 = arith.addf %355, %356 : vector<8x128xf32>
    %358 = arith.addf %357, %5 : vector<8x128xf32>
    %359 = arith.addf %358, %358 : vector<8x128xf32>
    %360 = arith.select %17, %359, %358 : vector<8x128xi1>, vector<8x128xf32>
    %361 = arith.negf %360 : vector<8x128xf32>
    %362 = math.exp %361 : vector<8x128xf32>
    %cst_64 = arith.constant 1.000000e+00 : f32
    %363 = vector.broadcast %cst_64 : f32 to vector<8x128xf32>
    %364 = arith.addf %363, %362 : vector<8x128xf32>
    %365 = arith.divf %363, %364 : vector<8x128xf32>
    %366 = arith.addf %365, %365 : vector<8x128xf32>
    %cst_65 = arith.constant 1.000000e+00 : f32
    %367 = vector.broadcast %cst_65 : f32 to vector<8x128xf32>
    %368 = arith.subf %366, %367 : vector<8x128xf32>
    %369 = arith.select %17, %368, %365 : vector<8x128xi1>, vector<8x128xf32>
    %370 = vector.extract_strided_slice %369 {offsets = [0, 0], sizes = [8, 32], strides = [1, 1]} : vector<8x128xf32> to vector<8x32xf32>
    %371 = vector.extract_strided_slice %369 {offsets = [0, 32], sizes = [8, 32], strides = [1, 1]} : vector<8x128xf32> to vector<8x32xf32>
    %372 = vector.extract_strided_slice %369 {offsets = [0, 64], sizes = [8, 32], strides = [1, 1]} : vector<8x128xf32> to vector<8x32xf32>
    %373 = vector.extract_strided_slice %369 {offsets = [0, 96], sizes = [8, 32], strides = [1, 1]} : vector<8x128xf32> to vector<8x32xf32>
    %374 = arith.mulf %370, %328 : vector<8x32xf32>
    %375 = arith.mulf %371, %372 : vector<8x32xf32>
    %376 = arith.addf %374, %375 : vector<8x32xf32>
    %377 = math.tanh %376 : vector<8x32xf32>
    %378 = arith.mulf %373, %377 : vector<8x32xf32>
    %cst_66 = arith.constant dense<0.000000e+00> : vector<8x128xf32>
    %379 = tpu.matmul %378, %1, %cst_66 {dimension_numbers = #tpu.dot_dimension_numbers<[1], [0], [0], [1], [0, 0, 1, 1], [], []>} : vector<8x32xf32>, vector<32x128xf32>, vector<8x128xf32> -> vector<8x128xf32>
    %cst_67 = arith.constant dense<0.000000e+00> : vector<8x128xf32>
    %380 = tpu.matmul %354, %2, %cst_67 {dimension_numbers = #tpu.dot_dimension_numbers<[1], [0], [0], [1], [0, 0, 1, 1], [], []>} : vector<8x32xf32>, vector<32x128xf32>, vector<8x128xf32> -> vector<8x128xf32>
    %381 = arith.addf %379, %380 : vector<8x128xf32>
    %382 = arith.addf %381, %8 : vector<8x128xf32>
    %383 = arith.addf %382, %382 : vector<8x128xf32>
    %384 = arith.select %17, %383, %382 : vector<8x128xi1>, vector<8x128xf32>
    %385 = arith.negf %384 : vector<8x128xf32>
    %386 = math.exp %385 : vector<8x128xf32>
    %cst_68 = arith.constant 1.000000e+00 : f32
    %387 = vector.broadcast %cst_68 : f32 to vector<8x128xf32>
    %388 = arith.addf %387, %386 : vector<8x128xf32>
    %389 = arith.divf %387, %388 : vector<8x128xf32>
    %390 = arith.addf %389, %389 : vector<8x128xf32>
    %cst_69 = arith.constant 1.000000e+00 : f32
    %391 = vector.broadcast %cst_69 : f32 to vector<8x128xf32>
    %392 = arith.subf %390, %391 : vector<8x128xf32>
    %393 = arith.select %17, %392, %389 : vector<8x128xi1>, vector<8x128xf32>
    %394 = vector.extract_strided_slice %393 {offsets = [0, 0], sizes = [8, 32], strides = [1, 1]} : vector<8x128xf32> to vector<8x32xf32>
    %395 = vector.extract_strided_slice %393 {offsets = [0, 32], sizes = [8, 32], strides = [1, 1]} : vector<8x128xf32> to vector<8x32xf32>
    %396 = vector.extract_strided_slice %393 {offsets = [0, 64], sizes = [8, 32], strides = [1, 1]} : vector<8x128xf32> to vector<8x32xf32>
    %397 = vector.extract_strided_slice %393 {offsets = [0, 96], sizes = [8, 32], strides = [1, 1]} : vector<8x128xf32> to vector<8x32xf32>
    %398 = arith.mulf %394, %352 : vector<8x32xf32>
    %399 = arith.mulf %395, %396 : vector<8x32xf32>
    %400 = arith.addf %398, %399 : vector<8x32xf32>
    %401 = math.tanh %400 : vector<8x32xf32>
    %402 = arith.mulf %397, %401 : vector<8x32xf32>
    %c0_70 = arith.constant 0 : index
    %c0_71 = arith.constant 0 : index
    %403 = vector.load %arg7[%c0_70, %c0_71] : memref<32x128xf32, #tpu.memory_space<vmem>>, vector<32x128xf32>
    %cst_72 = arith.constant dense<0.000000e+00> : vector<8x128xf32>
    %404 = tpu.matmul %402, %403, %cst_72 {dimension_numbers = #tpu.dot_dimension_numbers<[1], [0], [0], [1], [0, 0, 1, 1], [], []>} : vector<8x32xf32>, vector<32x128xf32>, vector<8x128xf32> -> vector<8x128xf32>
    %c0_73 = arith.constant 0 : index
    %c0_74 = arith.constant 0 : index
    %405 = vector.load %arg8[%c0_73, %c0_74] : memref<1x128xf32, #tpu.memory_space<vmem>>, vector<1x128xf32>
    %406 = vector.broadcast %405 : vector<1x128xf32> to vector<8x128xf32>
    %407 = arith.addf %404, %406 : vector<8x128xf32>
    %c0_75 = arith.constant 0 : index
    %c0_76 = arith.constant 0 : index
    %408 = vector.load %arg9[%c0_75, %c0_76] : memref<8x128xf32, #tpu.memory_space<vmem>>, vector<8x128xf32>
    tpu.vector_store %arg9[%c0_75, %c0_76], %407 {strides = array<i32>} : memref<8x128xf32, #tpu.memory_space<vmem>>, vector<8x128xf32>,
    return
  }
}

</mosaic_0001>

<llo_original>
// kernel: lstm_net_forward.1
$region0: #{lstm_net_forward.1}
  #allocation0 [shape = 'u32[]', space=smem, size = 0x4, offset = 0x4, fixed_abs, tag = 'smem constant byte address 0x4 - core index']
  #allocation1 [shape = 'u32[72,128]{1,0:T(1,128)}', space=vmem, size = 0x9000, scoped, tag = 'internal scratch']
  %s0 = inlined_call_operand.vmem [shape: f32[64,16], index: 0, kind: input, shape index: {}]
  %s1 = inlined_call_operand.vmem [shape: f32[16,128], index: 1, kind: input, shape index: {}]
  %s2 = inlined_call_operand.vmem [shape: f32[32,128], index: 2, kind: input, shape index: {}]
  %s3 = inlined_call_operand.vmem [shape: f32[1,128], index: 3, kind: input, shape index: {}]
  %s4 = inlined_call_operand.vmem [shape: f32[32,128], index: 4, kind: input, shape index: {}]
  %s5 = inlined_call_operand.vmem [shape: f32[32,128], index: 5, kind: input, shape index: {}]
  %s6 = inlined_call_operand.vmem [shape: f32[1,128], index: 6, kind: input, shape index: {}]
  %s7 = inlined_call_operand.vmem [shape: f32[32,128], index: 7, kind: input, shape index: {}]
  %s8 = inlined_call_operand.vmem [shape: f32[1,128], index: 8, kind: input, shape index: {}]
  %s9 = inlined_call_operand.vmem [shape: f32[8,128], index: 9, kind: output, shape index: {}]
  %s10 = sld [smem:[#allocation0]]
  $region46: #{lstm_net_forward.1} parent=0
    _
  %s12 = ssub.s32 1, %s10
  %s13 = scalar_select 0, %s12, %s10
  // Predicated region
  $region2: #{lstm_net_forward.1} parent=0 // pred_check
    _
  $region3: #{lstm_net_forward.1} parent=0 // pred_check_branch
    %15 = sbr.rel (0) target = $region5
  $region4: #{lstm_net_forward.1} parent=0 // pred_region
    _
  $region5: #{lstm_net_forward.1} parent=0 // pred_fallthru
    _
  // Predicated region
  $region6: #{lstm_net_forward.1} parent=0 // pred_check
    _
  $region7: #{lstm_net_forward.1} parent=0 // pred_check_branch
    %17 = sbr.rel (0) target = $region9
  $region8: #{lstm_net_forward.1} parent=0 // pred_region
    _
  $region9: #{lstm_net_forward.1} parent=0 // pred_fallthru
    _
  // Predicated region
  $region10: #{lstm_net_forward.1} parent=0 // pred_check
    _
  $region11: #{lstm_net_forward.1} parent=0 // pred_check_branch
    %19 = sbr.rel (0) target = $region13
  $region12: #{lstm_net_forward.1} parent=0 // pred_region
    _
  $region13: #{lstm_net_forward.1} parent=0 // pred_fallthru
    _
  // Predicated region
  $region14: #{lstm_net_forward.1} parent=0 // pred_check
    _
  $region15: #{lstm_net_forward.1} parent=0 // pred_check_branch
    %21 = sbr.rel (0) target = $region17
  $region16: #{lstm_net_forward.1} parent=0 // pred_region
    _
  $region17: #{lstm_net_forward.1} parent=0 // pred_fallthru
    _
  // Predicated region
  $region18: #{lstm_net_forward.1} parent=0 // pred_check
    _
  $region19: #{lstm_net_forward.1} parent=0 // pred_check_branch
    %23 = sbr.rel (0) target = $region21
  $region20: #{lstm_net_forward.1} parent=0 // pred_region
    _
  $region21: #{lstm_net_forward.1} parent=0 // pred_fallthru
    _
  // Predicated region
  $region22: #{lstm_net_forward.1} parent=0 // pred_check
    _
  $region23: #{lstm_net_forward.1} parent=0 // pred_check_branch
    %25 = sbr.rel (0) target = $region25
  $region24: #{lstm_net_forward.1} parent=0 // pred_region
    _
  $region25: #{lstm_net_forward.1} parent=0 // pred_fallthru
    _
  // Predicated region
  $region26: #{lstm_net_forward.1} parent=0 // pred_check
    _
  $region27: #{lstm_net_forward.1} parent=0 // pred_check_branch
    %27 = sbr.rel (0) target = $region29
  $region28: #{lstm_net_forward.1} parent=0 // pred_region
    _
  $region29: #{lstm_net_forward.1} parent=0 // pred_fallthru
    _
  // Predicated region
  $region30: #{lstm_net_forward.1} parent=0 // pred_check
    _
  $region31: #{lstm_net_forward.1} parent=0 // pred_check_branch
    %29 = sbr.rel (0) target = $region33
  $region32: #{lstm_net_forward.1} parent=0 // pred_region
    _
  $region33: #{lstm_net_forward.1} parent=0 // pred_fallthru
    _
  // Predicated region
  $region34: #{lstm_net_forward.1} parent=0 // pred_check
    _
  $region35: #{lstm_net_forward.1} parent=0 // pred_check_branch
    %31 = sbr.rel (0) target = $region37
  $region36: #{lstm_net_forward.1} parent=0 // pred_region
    _
  $region37: #{lstm_net_forward.1} parent=0 // pred_fallthru
    _
  %v32 = vld [vmem:[%s2] sm:$0xff]
  %v33 = vld [vmem:[%s2 + $0x8] sm:$0xff]
  %v34 = vld [vmem:[%s2 + $0x10] sm:$0xff]
  %v35 = vld [vmem:[%s2 + $0x18] sm:$0xff]
  %v36 = vld [vmem:[%s4] sm:$0xff]
  %v37 = vld [vmem:[%s4 + $0x8] sm:$0xff]
  %v38 = vld [vmem:[%s4 + $0x10] sm:$0xff]
  %v39 = vld [vmem:[%s4 + $0x18] sm:$0xff]
  %v40 = vld [vmem:[%s5] sm:$0xff]
  %v41 = vld [vmem:[%s5 + $0x8] sm:$0xff]
  %v42 = vld [vmem:[%s5 + $0x10] sm:$0xff]
  %v43 = vld [vmem:[%s5 + $0x18] sm:$0xff]
  %v44 = vld [vmem:[%s3] sm:$0x1]
  %v46 = vperm.slane %v44, 0
  %v48 = vld [vmem:[%s6] sm:$0x1]
  %v50 = vperm.slane %v48, 0
  %v52 = vld [vmem:[%s0] sm:$0xff]
  %v53 = vld [vmem:[%s0 + $0x8] sm:$0xff]
  %v54 = vld [vmem:[%s0 + $0x10] sm:$0xff]
  %v55 = vld [vmem:[%s0 + $0x18] sm:$0xff]
  %v56 = vld [vmem:[%s0 + $0x20] sm:$0xff]
  %v57 = vld [vmem:[%s0 + $0x28] sm:$0xff]
  %v58 = vld [vmem:[%s0 + $0x30] sm:$0xff]
  %v59 = vld [vmem:[%s0 + $0x38] sm:$0xff]
  %v60 = vld [vmem:[%s1] sm:$0xff]
  %v61 = vld [vmem:[%s1 + $0x8] sm:$0xff]
  %vm62 = vcmask 130048
  %v64 = vsel %vm62, %v52, 0
  %v67 = vsel %vm62, %v53, 0
  %v70 = vsel %vm62, %v54, 0
  %v73 = vsel %vm62, %v55, 0
  %v76 = vsel %vm62, %v56, 0
  %v79 = vsel %vm62, %v57, 0
  %v82 = vsel %vm62, %v58, 0
  %v85 = vsel %vm62, %v59, 0
  %87 = vmatpush.msra.mxu0 0.0
  %88 = vmatpush.msra.mxu0 0.0
  %89 = vmatpush.msra.mxu0 0.0
  %90 = vmatpush.msra.mxu0 0.0
  %91 = vmatpush.msra.mxu0 0.0
  %92 = vmatpush.msra.mxu0 0.0
  %93 = vmatpush.msra.mxu0 0.0
  %94 = vmatpush.msra.mxu0 0.0
  %95 = vmatpush.msra.mxu0 0.0
  %96 = vmatpush.msra.mxu0 0.0
  %97 = vmatpush.msra.mxu0 0.0
  %98 = vmatpush.msra.mxu0 0.0
  %99 = vmatpush.msra.mxu0 0.0
  %100 = vmatpush.msra.mxu0 0.0
  %101 = vmatpush.msra.mxu0 %v61
  %102 = vmatpush.msra.mxu0 %v60
  %103 = vmatmul.f32.gmra.mxu0 %v64
  %v104 = vpop.f32.mrf.mxu0
  %v105 = vadd.f32 0.0, %v104
  %106 = vmatmul.f32.gmra.mxu0 %v67
  %v107 = vpop.f32.mrf.mxu0
  %v108 = vadd.f32 0.0, %v107
  %109 = vmatmul.f32.gmra.mxu0 %v70
  %v110 = vpop.f32.mrf.mxu0
  %v111 = vadd.f32 0.0, %v110
  %112 = vmatmul.f32.gmra.mxu0 %v73
  %v113 = vpop.f32.mrf.mxu0
  %v114 = vadd.f32 0.0, %v113
  %115 = vmatmul.f32.gmra.mxu0 %v76
  %v116 = vpop.f32.mrf.mxu0
  %v117 = vadd.f32 0.0, %v116
  %118 = vmatmul.f32.gmra.mxu0 %v79
  %v119 = vpop.f32.mrf.mxu0
  %v120 = vadd.f32 0.0, %v119
  %121 = vmatmul.f32.gmra.mxu0 %v82
  %v122 = vpop.f32.mrf.mxu0
  %v123 = vadd.f32 0.0, %v122
  %124 = vmatmul.f32.gmra.mxu0 %v85
  %v125 = vpop.f32.mrf.mxu0
  %v126 = vadd.f32 0.0, %v125
  %127 = vdwg.mxu0
  %v128 = vlaneseq
  %v129 = vand.u32 %v128, 127
  %vm130 = vcmp.ge.s32.totalorder %v129, 64
  %vm131 = vcmp.lt.s32.totalorder %v129, 96
  %vm132 = vmand %vm130, %vm131
  %vm133 = vcmask 261120
  %v135 = vsel %vm133, 0.0, 0
  %137 = vmatpush.msra.mxu0 0.0
  %138 = vmatpush.msra.mxu0 0.0
  %139 = vmatpush.msra.mxu0 0.0
  %140 = vmatpush.msra.mxu0 0.0
  %141 = vmatpush.msra.mxu0 0.0
  %142 = vmatpush.msra.mxu0 0.0
  %143 = vmatpush.msra.mxu0 0.0
  %144 = vmatpush.msra.mxu0 0.0
  %145 = vmatpush.msra.mxu0 0.0
  %146 = vmatpush.msra.mxu0 0.0
  %147 = vmatpush.msra.mxu0 0.0
  %148 = vmatpush.msra.mxu0 0.0
  %149 = vmatpush.msra.mxu0 %v35
  %150 = vmatpush.msra.mxu0 %v34
  %151 = vmatpush.msra.mxu0 %v33
  %152 = vmatpush.msra.mxu0 %v32
  %153 = vmatmul.f32.gmra.mxu0 %v135
  %v154 = vpop.f32.mrf.mxu0
  %v155 = vadd.f32 0.0, %v154
  %156 = vdwg.mxu0
  %v157 = vadd.f32 %v105, %v155
  %v158 = vadd.f32 %v157, %v46
  %v159 = vadd.f32 %v158, %v158
  %v160 = vsel %vm132, %v159, %v158
  %v161 = vxor.u32 %v160, 2147483648
  %v162 = vmul.f32 %v161, 1.442695
  %v163 = vpow.pop %v162
  %v164 = vadd.f32 %v163, 1.0
  %v165 = vrcp.pop %v164
  %v166 = vmul.f32 %v164, %v165
  %v167 = vsub.f32 1.0, %v166
  %v168 = vmul.f32 %v165, %v167
  %v169 = vadd.f32 %v165, %v168
  %vm170 = vweird.f32 %v164
  %vm171 = vweird.f32 %v165
  %vm172 = vmor %vm170, %vm171
  %v173 = vsel %vm172, %v165, %v169
  %v174 = vand.u32 2147483647, %v164
  %vm175 = vcmp.eq.f32.partialorder %v174, 8.507059e+37
  %v176 = vand.u32 %v164, 2147483648
  %v177 = vor.u32 1.1754944e-38, %v176
  %v178 = vsel %vm175, %v177, %v173
  %v179 = vmul.f32 1.0, %v178
  %v180 = vadd.f32 %v179, %v179
  %v181 = vsub.f32 %v180, 1.0
  %v182 = vsel %vm132, %v181, %v179
  %v183 = vmul.f32 %v182, 0.0
  %185 = vrot.lane.b32.xlu0 %v182, 96
  %v186 = vpop.permute.xlu0 %185
  %v188 = vmul.f32 %v182, %v186
  %190 = vrot.lane.b32.xlu0 %v188, 96
  %v191 = vpop.permute.xlu0 %190
  %v193 = vadd.f32 %v183, %v191
  %v194 = vtanh.pop %v193
  %196 = vrot.lane.b32.xlu0 %v194, 96
  %v197 = vpop.permute.xlu0 %196
  %v199 = vmul.f32 %v182, %v197
  %200 = vmatpush.msra.mxu0 0.0
  %201 = vmatpush.msra.mxu0 0.0
  %202 = vmatpush.msra.mxu0 0.0
  %203 = vmatpush.msra.mxu0 0.0
  %204 = vmatpush.msra.mxu0 0.0
  %205 = vmatpush.msra.mxu0 0.0
  %206 = vmatpush.msra.mxu0 0.0
  %207 = vmatpush.msra.mxu0 0.0
  %208 = vmatpush.msra.mxu0 0.0
  %209 = vmatpush.msra.mxu0 0.0
  %210 = vmatpush.msra.mxu0 0.0
  %211 = vmatpush.msra.mxu0 0.0
  %212 = vmatpush.msra.mxu0 %v43
  %213 = vmatpush.msra.mxu0 %v42
  %214 = vmatpush.msra.mxu0 %v41
  %215 = vmatpush.msra.mxu0 %v40
  %216 = vmatmul.f32.gmra.mxu0 %v135
  %v217 = vpop.f32.mrf.mxu0
  %v218 = vadd.f32 0.0, %v217
  %219 = vdwg.mxu0
  %221 = vrot.lane.b32.xlu0 %v199, 32
  %v222 = vpop.permute.xlu0 %221
  %v223 = vsel %vm133, %v222, 0
  %225 = vmatpush.msra.mxu0 0.0
  %226 = vmatpush.msra.mxu0 0.0
  %227 = vmatpush.msra.mxu0 0.0
  %228 = vmatpush.msra.mxu0 0.0
  %229 = vmatpush.msra.mxu0 0.0
  %230 = vmatpush.msra.mxu0 0.0
  %231 = vmatpush.msra.mxu0 0.0
  %232 = vmatpush.msra.mxu0 0.0
  %233 = vmatpush.msra.mxu0 0.0
  %234 = vmatpush.msra.mxu0 0.0
  %235 = vmatpush.msra.mxu0 0.0
  %236 = vmatpush.msra.mxu0 0.0
  %237 = vmatpush.msra.mxu0 %v39
  %238 = vmatpush.msra.mxu0 %v38
  %239 = vmatpush.msra.mxu0 %v37
  %240 = vmatpush.msra.mxu0 %v36
  %241 = vmatmul.f32.gmra.mxu0 %v223
  %v242 = vpop.f32.mrf.mxu0
  %v243 = vadd.f32 %v218, %v242
  %244 = vdwg.mxu0
  %v245 = vadd.f32 %v243, %v50
  %v246 = vadd.f32 %v245, %v245
  %v247 = vsel %vm132, %v246, %v245
  %v248 = vxor.u32 %v247, 2147483648
  %v249 = vmul.f32 %v248, 1.442695
  %v250 = vpow.pop %v249
  %v251 = vadd.f32 %v250, 1.0
  %v252 = vrcp.pop %v251
  %v253 = vmul.f32 %v251, %v252
  %v254 = vsub.f32 1.0, %v253
  %v255 = vmul.f32 %v252, %v254
  %v256 = vadd.f32 %v252, %v255
  %vm257 = vweird.f32 %v251
  %vm258 = vweird.f32 %v252
  %vm259 = vmor %vm257, %vm258
  %v260 = vsel %vm259, %v252, %v256
  %v261 = vand.u32 2147483647, %v251
  %vm262 = vcmp.eq.f32.partialorder %v261, 8.507059e+37
  %v263 = vand.u32 %v251, 2147483648
  %v264 = vor.u32 1.1754944e-38, %v263
  %v265 = vsel %vm262, %v264, %v260
  %v266 = vmul.f32 1.0, %v265
  %v267 = vadd.f32 %v266, %v266
  %v268 = vsub.f32 %v267, 1.0
  %v269 = vsel %vm132, %v268, %v266
  %v270 = vmul.f32 %v269, 0.0
  %272 = vrot.lane.b32.xlu0 %v269, 96
  %v273 = vpop.permute.xlu0 %272
  %v275 = vmul.f32 %v269, %v273
  %277 = vrot.lane.b32.xlu0 %v275, 96
  %v278 = vpop.permute.xlu0 %277
  %v280 = vadd.f32 %v270, %v278
  %v281 = vtanh.pop %v280
  %283 = vrot.lane.b32.xlu0 %v281, 96
  %v284 = vpop.permute.xlu0 %283
  %v286 = vmul.f32 %v269, %v284
  %287 = vmatpush.msra.mxu0 0.0
  %288 = vmatpush.msra.mxu0 0.0
  %289 = vmatpush.msra.mxu0 0.0
  %290 = vmatpush.msra.mxu0 0.0
  %291 = vmatpush.msra.mxu0 0.0
  %292 = vmatpush.msra.mxu0 0.0
  %293 = vmatpush.msra.mxu0 0.0
  %294 = vmatpush.msra.mxu0 0.0
  %295 = vmatpush.msra.mxu0 0.0
  %296 = vmatpush.msra.mxu0 0.0
  %297 = vmatpush.msra.mxu0 0.0
  %298 = vmatpush.msra.mxu0 0.0
  %299 = vmatpush.msra.mxu0 %v35
  %300 = vmatpush.msra.mxu0 %v34
  %301 = vmatpush.msra.mxu0 %v33
  %302 = vmatpush.msra.mxu0 %v32
  %303 = vmatmul.f32.gmra.mxu0 %v223
  %v304 = vpop.f32.mrf.mxu0
  %v305 = vadd.f32 0.0, %v304
  %306 = vdwg.mxu0
  %v307 = vadd.f32 %v108, %v305
  %v308 = vadd.f32 %v307, %v46
  %v309 = vadd.f32 %v308, %v308
  %v310 = vsel %vm132, %v309, %v308
  %v311 = vxor.u32 %v310, 2147483648
  %v312 = vmul.f32 %v311, 1.442695
  %v313 = vpow.pop %v312
  %v314 = vadd.f32 %v313, 1.0
  %v315 = vrcp.pop %v314
  %v316 = vmul.f32 %v314, %v315
  %v317 = vsub.f32 1.0, %v316
  %v318 = vmul.f32 %v315, %v317
  %v319 = vadd.f32 %v315, %v318
  %vm320 = vweird.f32 %v314
  %vm321 = vweird.f32 %v315
  %vm322 = vmor %vm320, %vm321
  %v323 = vsel %vm322, %v315, %v319
  %v324 = vand.u32 2147483647, %v314
  %vm325 = vcmp.eq.f32.partialorder %v324, 8.507059e+37
  %v326 = vand.u32 %v314, 2147483648
  %v327 = vor.u32 1.1754944e-38, %v326
  %v328 = vsel %vm325, %v327, %v323
  %v329 = vmul.f32 1.0, %v328
  %v330 = vadd.f32 %v329, %v329
  %v331 = vsub.f32 %v330, 1.0
  %v332 = vsel %vm132, %v331, %v329
  %v333 = vmul.f32 %v332, %v193
  %335 = vrot.lane.b32.xlu0 %v332, 96
  %v336 = vpop.permute.xlu0 %335
  %v338 = vmul.f32 %v332, %v336
  %340 = vrot.lane.b32.xlu0 %v338, 96
  %v341 = vpop.permute.xlu0 %340
  %v343 = vadd.f32 %v333, %v341
  %v344 = vtanh.pop %v343
  %346 = vrot.lane.b32.xlu0 %v344, 96
  %v347 = vpop.permute.xlu0 %346
  %v349 = vmul.f32 %v332, %v347
  %351 = vrot.lane.b32.xlu0 %v286, 32
  %v352 = vpop.permute.xlu0 %351
  %v353 = vsel %vm133, %v352, 0
  %355 = vmatpush.msra.mxu0 0.0
  %356 = vmatpush.msra.mxu0 0.0
  %357 = vmatpush.msra.mxu0 0.0
  %358 = vmatpush.msra.mxu0 0.0
  %359 = vmatpush.msra.mxu0 0.0
  %360 = vmatpush.msra.mxu0 0.0
  %361 = vmatpush.msra.mxu0 0.0
  %362 = vmatpush.msra.mxu0 0.0
  %363 = vmatpush.msra.mxu0 0.0
  %364 = vmatpush.msra.mxu0 0.0
  %365 = vmatpush.msra.mxu0 0.0
  %366 = vmatpush.msra.mxu0 0.0
  %367 = vmatpush.msra.mxu0 %v43
  %368 = vmatpush.msra.mxu0 %v42
  %369 = vmatpush.msra.mxu0 %v41
  %370 = vmatpush.msra.mxu0 %v40
  %371 = vmatmul.f32.gmra.mxu0 %v353
  %v372 = vpop.f32.mrf.mxu0
  %v373 = vadd.f32 0.0, %v372
  %374 = vdwg.mxu0
  %376 = vrot.lane.b32.xlu0 %v349, 32
  %v377 = vpop.permute.xlu0 %376
  %v378 = vsel %vm133, %v377, 0
  %380 = vmatpush.msra.mxu0 0.0
  %381 = vmatpush.msra.mxu0 0.0
  %382 = vmatpush.msra.mxu0 0.0
  %383 = vmatpush.msra.mxu0 0.0
  %384 = vmatpush.msra.mxu0 0.0
  %385 = vmatpush.msra.mxu0 0.0
  %386 = vmatpush.msra.mxu0 0.0
  %387 = vmatpush.msra.mxu0 0.0
  %388 = vmatpush.msra.mxu0 0.0
  %389 = vmatpush.msra.mxu0 0.0
  %390 = vmatpush.msra.mxu0 0.0
  %391 = vmatpush.msra.mxu0 0.0
  %392 = vmatpush.msra.mxu0 %v39
  %393 = vmatpush.msra.mxu0 %v38
  %394 = vmatpush.msra.mxu0 %v37
  %395 = vmatpush.msra.mxu0 %v36
  %396 = vmatmul.f32.gmra.mxu0 %v378
  %v397 = vpop.f32.mrf.mxu0
  %v398 = vadd.f32 %v373, %v397
  %399 = vdwg.mxu0
  %v400 = vadd.f32 %v398, %v50
  %v401 = vadd.f32 %v400, %v400
  %v402 = vsel %vm132, %v401, %v400
  %v403 = vxor.u32 %v402, 2147483648
  %v404 = vmul.f32 %v403, 1.442695
  %v405 = vpow.pop %v404
  %v406 = vadd.f32 %v405, 1.0
  %v407 = vrcp.pop %v406
  %v408 = vmul.f32 %v406, %v407
  %v409 = vsub.f32 1.0, %v408
  %v410 = vmul.f32 %v407, %v409
  %v411 = vadd.f32 %v407, %v410
  %vm412 = vweird.f32 %v406
  %vm413 = vweird.f32 %v407
  %vm414 = vmor %vm412, %vm413
  %v415 = vsel %vm414, %v407, %v411
  %v416 = vand.u32 2147483647, %v406
  %vm417 = vcmp.eq.f32.partialorder %v416, 8.507059e+37
  %v418 = vand.u32 %v406, 2147483648
  %v419 = vor.u32 1.1754944e-38, %v418
  %v420 = vsel %vm417, %v419, %v415
  %v421 = vmul.f32 1.0, %v420
  %v422 = vadd.f32 %v421, %v421
  %v423 = vsub.f32 %v422, 1.0
  %v424 = vsel %vm132, %v423, %v421
  %v425 = vmul.f32 %v424, %v280
  %427 = vrot.lane.b32.xlu0 %v424, 96
  %v428 = vpop.permute.xlu0 %427
  %v430 = vmul.f32 %v424, %v428
  %432 = vrot.lane.b32.xlu0 %v430, 96
  %v433 = vpop.permute.xlu0 %432
  %v435 = vadd.f32 %v425, %v433
  %v436 = vtanh.pop %v435
  %438 = vrot.lane.b32.xlu0 %v436, 96
  %v439 = vpop.permute.xlu0 %438
  %v441 = vmul.f32 %v424, %v439
  %442 = vmatpush.msra.mxu0 0.0
  %443 = vmatpush.msra.mxu0 0.0
  %444 = vmatpush.msra.mxu0 0.0
  %445 = vmatpush.msra.mxu0 0.0
  %446 = vmatpush.msra.mxu0 0.0
  %447 = vmatpush.msra.mxu0 0.0
  %448 = vmatpush.msra.mxu0 0.0
  %449 = vmatpush.msra.mxu0 0.0
  %450 = vmatpush.msra.mxu0 0.0
  %451 = vmatpush.msra.mxu0 0.0
  %452 = vmatpush.msra.mxu0 0.0
  %453 = vmatpush.msra.mxu0 0.0
  %454 = vmatpush.msra.mxu0 %v35
  %455 = vmatpush.msra.mxu0 %v34
  %456 = vmatpush.msra.mxu0 %v33
  %457 = vmatpush.msra.mxu0 %v32
  %458 = vmatmul.f32.gmra.mxu0 %v378
  %v459 = vpop.f32.mrf.mxu0
  %v460 = vadd.f32 0.0, %v459
  %461 = vdwg.mxu0
  %v462 = vadd.f32 %v111, %v460
  %v463 = vadd.f32 %v462, %v46
  %v464 = vadd.f32 %v463, %v463
  %v465 = vsel %vm132, %v464, %v463
  %v466 = vxor.u32 %v465, 2147483648
  %v467 = vmul.f32 %v466, 1.442695
  %v468 = vpow.pop %v467
  %v469 = vadd.f32 %v468, 1.0
  %v470 = vrcp.pop %v469
  %v471 = vmul.f32 %v469, %v470
  %v472 = vsub.f32 1.0, %v471
  %v473 = vmul.f32 %v470, %v472
  %v474 = vadd.f32 %v470, %v473
  %vm475 = vweird.f32 %v469
  %vm476 = vweird.f32 %v470
  %vm477 = vmor %vm475, %vm476
  %v478 = vsel %vm477, %v470, %v474
  %v479 = vand.u32 2147483647, %v469
  %vm480 = vcmp.eq.f32.partialorder %v479, 8.507059e+37
  %v481 = vand.u32 %v469, 2147483648
  %v482 = vor.u32 1.1754944e-38, %v481
  %v483 = vsel %vm480, %v482, %v478
  %v484 = vmul.f32 1.0, %v483
  %v485 = vadd.f32 %v484, %v484
  %v486 = vsub.f32 %v485, 1.0
  %v487 = vsel %vm132, %v486, %v484
  %v488 = vmul.f32 %v487, %v343
  %490 = vrot.lane.b32.xlu0 %v487, 96
  %v491 = vpop.permute.xlu0 %490
  %v493 = vmul.f32 %v487, %v491
  %495 = vrot.lane.b32.xlu0 %v493, 96
  %v496 = vpop.permute.xlu0 %495
  %v498 = vadd.f32 %v488, %v496
  %v499 = vtanh.pop %v498
  %501 = vrot.lane.b32.xlu0 %v499, 96
  %v502 = vpop.permute.xlu0 %501
  %v504 = vmul.f32 %v487, %v502
  %506 = vrot.lane.b32.xlu0 %v441, 32
  %v507 = vpop.permute.xlu0 %506
  %v508 = vsel %vm133, %v507, 0
  %510 = vmatpush.msra.mxu0 0.0
  %511 = vmatpush.msra.mxu0 0.0
  %512 = vmatpush.msra.mxu0 0.0
  %513 = vmatpush.msra.mxu0 0.0
  %514 = vmatpush.msra.mxu0 0.0
  %515 = vmatpush.msra.mxu0 0.0
  %516 = vmatpush.msra.mxu0 0.0
  %517 = vmatpush.msra.mxu0 0.0
  %518 = vmatpush.msra.mxu0 0.0
  %519 = vmatpush.msra.mxu0 0.0
  %520 = vmatpush.msra.mxu0 0.0
  %521 = vmatpush.msra.mxu0 0.0
  %522 = vmatpush.msra.mxu0 %v43
  %523 = vmatpush.msra.mxu0 %v42
  %524 = vmatpush.msra.mxu0 %v41
  %525 = vmatpush.msra.mxu0 %v40
  %526 = vmatmul.f32.gmra.mxu0 %v508
  %v527 = vpop.f32.mrf.mxu0
  %v528 = vadd.f32 0.0, %v527
  %529 = vdwg.mxu0
  %531 = vrot.lane.b32.xlu0 %v504, 32
  %v532 = vpop.permute.xlu0 %531
  %v533 = vsel %vm133, %v532, 0
  %535 = vmatpush.msra.mxu0 0.0
  %536 = vmatpush.msra.mxu0 0.0
  %537 = vmatpush.msra.mxu0 0.0
  %538 = vmatpush.msra.mxu0 0.0
  %539 = vmatpush.msra.mxu0 0.0
  %540 = vmatpush.msra.mxu0 0.0
  %541 = vmatpush.msra.mxu0 0.0
  %542 = vmatpush.msra.mxu0 0.0
  %543 = vmatpush.msra.mxu0 0.0
  %544 = vmatpush.msra.mxu0 0.0
  %545 = vmatpush.msra.mxu0 0.0
  %546 = vmatpush.msra.mxu0 0.0
  %547 = vmatpush.msra.mxu0 %v39
  %548 = vmatpush.msra.mxu0 %v38
  %549 = vmatpush.msra.mxu0 %v37
  %550 = vmatpush.msra.mxu0 %v36
  %551 = vmatmul.f32.gmra.mxu0 %v533
  %v552 = vpop.f32.mrf.mxu0
  %v553 = vadd.f32 %v528, %v552
  %554 = vdwg.mxu0
  %v555 = vadd.f32 %v553, %v50
  %v556 = vadd.f32 %v555, %v555
  %v557 = vsel %vm132, %v556, %v555
  %v558 = vxor.u32 %v557, 2147483648
  %v559 = vmul.f32 %v558, 1.442695
  %v560 = vpow.pop %v559
  %v561 = vadd.f32 %v560, 1.0
  %v562 = vrcp.pop %v561
  %v563 = vmul.f32 %v561, %v562
  %v564 = vsub.f32 1.0, %v563
  %v565 = vmul.f32 %v562, %v564
  %v566 = vadd.f32 %v562, %v565
  %vm567 = vweird.f32 %v561
  %vm568 = vweird.f32 %v562
  %vm569 = vmor %vm567, %vm568
  %v570 = vsel %vm569, %v562, %v566
  %v571 = vand.u32 2147483647, %v561
  %vm572 = vcmp.eq.f32.partialorder %v571, 8.507059e+37
  %v573 = vand.u32 %v561, 2147483648
  %v574 = vor.u32 1.1754944e-38, %v573
  %v575 = vsel %vm572, %v574, %v570
  %v576 = vmul.f32 1.0, %v575
  %v577 = vadd.f32 %v576, %v576
  %v578 = vsub.f32 %v577, 1.0
  %v579 = vsel %vm132, %v578, %v576
  %v580 = vmul.f32 %v579, %v435
  %582 = vrot.lane.b32.xlu0 %v579, 96
  %v583 = vpop.permute.xlu0 %582
  %v585 = vmul.f32 %v579, %v583
  %587 = vrot.lane.b32.xlu0 %v585, 96
  %v588 = vpop.permute.xlu0 %587
  %v590 = vadd.f32 %v580, %v588
  %v591 = vtanh.pop %v590
  %593 = vrot.lane.b32.xlu0 %v591, 96
  %v594 = vpop.permute.xlu0 %593
  %v596 = vmul.f32 %v579, %v594
  %597 = vmatpush.msra.mxu0 0.0
  %598 = vmatpush.msra.mxu0 0.0
  %599 = vmatpush.msra.mxu0 0.0
  %600 = vmatpush.msra.mxu0 0.0
  %601 = vmatpush.msra.mxu0 0.0
  %602 = vmatpush.msra.mxu0 0.0
  %603 = vmatpush.msra.mxu0 0.0
  %604 = vmatpush.msra.mxu0 0.0
  %605 = vmatpush.msra.mxu0 0.0
  %606 = vmatpush.msra.mxu0 0.0
  %607 = vmatpush.msra.mxu0 0.0
  %608 = vmatpush.msra.mxu0 0.0
  %609 = vmatpush.msra.mxu0 %v35
  %610 = vmatpush.msra.mxu0 %v34
  %611 = vmatpush.msra.mxu0 %v33
  %612 = vmatpush.msra.mxu0 %v32
  %613 = vmatmul.f32.gmra.mxu0 %v533
  %v614 = vpop.f32.mrf.mxu0
  %v615 = vadd.f32 0.0, %v614
  %616 = vdwg.mxu0
  %v617 = vadd.f32 %v114, %v615
  %v618 = vadd.f32 %v617, %v46
  %v619 = vadd.f32 %v618, %v618
  %v620 = vsel %vm132, %v619, %v618
  %v621 = vxor.u32 %v620, 2147483648
  %v622 = vmul.f32 %v621, 1.442695
  %v623 = vpow.pop %v622
  %v624 = vadd.f32 %v623, 1.0
  %v625 = vrcp.pop %v624
  %v626 = vmul.f32 %v624, %v625
  %v627 = vsub.f32 1.0, %v626
  %v628 = vmul.f32 %v625, %v627
  %v629 = vadd.f32 %v625, %v628
  %vm630 = vweird.f32 %v624
  %vm631 = vweird.f32 %v625
  %vm632 = vmor %vm630, %vm631
  %v633 = vsel %vm632, %v625, %v629
  %v634 = vand.u32 2147483647, %v624
  %vm635 = vcmp.eq.f32.partialorder %v634, 8.507059e+37
  %v636 = vand.u32 %v624, 2147483648
  %v637 = vor.u32 1.1754944e-38, %v636
  %v638 = vsel %vm635, %v637, %v633
  %v639 = vmul.f32 1.0, %v638
  %v640 = vadd.f32 %v639, %v639
  %v641 = vsub.f32 %v640, 1.0
  %v642 = vsel %vm132, %v641, %v639
  %v643 = vmul.f32 %v642, %v498
  %645 = vrot.lane.b32.xlu0 %v642, 96
  %v646 = vpop.permute.xlu0 %645
  %v648 = vmul.f32 %v642, %v646
  %650 = vrot.lane.b32.xlu0 %v648, 96
  %v651 = vpop.permute.xlu0 %650
  %v653 = vadd.f32 %v643, %v651
  %v654 = vtanh.pop %v653
  %656 = vrot.lane.b32.xlu0 %v654, 96
  %v657 = vpop.permute.xlu0 %656
  %v659 = vmul.f32 %v642, %v657
  %661 = vrot.lane.b32.xlu0 %v596, 32
  %v662 = vpop.permute.xlu0 %661
  %v663 = vsel %vm133, %v662, 0
  %665 = vmatpush.msra.mxu0 0.0
  %666 = vmatpush.msra.mxu0 0.0
  %667 = vmatpush.msra.mxu0 0.0
  %668 = vmatpush.msra.mxu0 0.0
  %669 = vmatpush.msra.mxu0 0.0
  %670 = vmatpush.msra.mxu0 0.0
  %671 = vmatpush.msra.mxu0 0.0
  %672 = vmatpush.msra.mxu0 0.0
  %673 = vmatpush.msra.mxu0 0.0
  %674 = vmatpush.msra.mxu0 0.0
  %675 = vmatpush.msra.mxu0 0.0
  %676 = vmatpush.msra.mxu0 0.0
  %677 = vmatpush.msra.mxu0 %v43
  %678 = vmatpush.msra.mxu0 %v42
  %679 = vmatpush.msra.mxu0 %v41
  %680 = vmatpush.msra.mxu0 %v40
  %681 = vmatmul.f32.gmra.mxu0 %v663
  %v682 = vpop.f32.mrf.mxu0
  %v683 = vadd.f32 0.0, %v682
  %684 = vdwg.mxu0
  %686 = vrot.lane.b32.xlu0 %v659, 32
  %v687 = vpop.permute.xlu0 %686
  %v688 = vsel %vm133, %v687, 0
  %690 = vmatpush.msra.mxu0 0.0
  %691 = vmatpush.msra.mxu0 0.0
  %692 = vmatpush.msra.mxu0 0.0
  %693 = vmatpush.msra.mxu0 0.0
  %694 = vmatpush.msra.mxu0 0.0
  %695 = vmatpush.msra.mxu0 0.0
  %696 = vmatpush.msra.mxu0 0.0
  %697 = vmatpush.msra.mxu0 0.0
  %698 = vmatpush.msra.mxu0 0.0
  %699 = vmatpush.msra.mxu0 0.0
  %700 = vmatpush.msra.mxu0 0.0
  %701 = vmatpush.msra.mxu0 0.0
  %702 = vmatpush.msra.mxu0 %v39
  %703 = vmatpush.msra.mxu0 %v38
  %704 = vmatpush.msra.mxu0 %v37
  %705 = vmatpush.msra.mxu0 %v36
  %706 = vmatmul.f32.gmra.mxu0 %v688
  %v707 = vpop.f32.mrf.mxu0
  %v708 = vadd.f32 %v683, %v707
  %709 = vdwg.mxu0
  %v710 = vadd.f32 %v708, %v50
  %v711 = vadd.f32 %v710, %v710
  %v712 = vsel %vm132, %v711, %v710
  %v713 = vxor.u32 %v712, 2147483648
  %v714 = vmul.f32 %v713, 1.442695
  %v715 = vpow.pop %v714
  %v716 = vadd.f32 %v715, 1.0
  %v717 = vrcp.pop %v716
  %v718 = vmul.f32 %v716, %v717
  %v719 = vsub.f32 1.0, %v718
  %v720 = vmul.f32 %v717, %v719
  %v721 = vadd.f32 %v717, %v720
  %vm722 = vweird.f32 %v716
  %vm723 = vweird.f32 %v717
  %vm724 = vmor %vm722, %vm723
  %v725 = vsel %vm724, %v717, %v721
  %v726 = vand.u32 2147483647, %v716
  %vm727 = vcmp.eq.f32.partialorder %v726, 8.507059e+37
  %v728 = vand.u32 %v716, 2147483648
  %v729 = vor.u32 1.1754944e-38, %v728
  %v730 = vsel %vm727, %v729, %v725
  %v731 = vmul.f32 1.0, %v730
  %v732 = vadd.f32 %v731, %v731
  %v733 = vsub.f32 %v732, 1.0
  %v734 = vsel %vm132, %v733, %v731
  %v735 = vmul.f32 %v734, %v590
  %737 = vrot.lane.b32.xlu0 %v734, 96
  %v738 = vpop.permute.xlu0 %737
  %v740 = vmul.f32 %v734, %v738
  %742 = vrot.lane.b32.xlu0 %v740, 96
  %v743 = vpop.permute.xlu0 %742
  %v745 = vadd.f32 %v735, %v743
  %v746 = vtanh.pop %v745
  %748 = vrot.lane.b32.xlu0 %v746, 96
  %v749 = vpop.permute.xlu0 %748
  %v751 = vmul.f32 %v734, %v749
  %752 = vmatpush.msra.mxu0 0.0
  %753 = vmatpush.msra.mxu0 0.0
  %754 = vmatpush.msra.mxu0 0.0
  %755 = vmatpush.msra.mxu0 0.0
  %756 = vmatpush.msra.mxu0 0.0
  %757 = vmatpush.msra.mxu0 0.0
  %758 = vmatpush.msra.mxu0 0.0
  %759 = vmatpush.msra.mxu0 0.0
  %760 = vmatpush.msra.mxu0 0.0
  %761 = vmatpush.msra.mxu0 0.0
  %762 = vmatpush.msra.mxu0 0.0
  %763 = vmatpush.msra.mxu0 0.0
  %764 = vmatpush.msra.mxu0 %v35
  %765 = vmatpush.msra.mxu0 %v34
  %766 = vmatpush.msra.mxu0 %v33
  %767 = vmatpush.msra.mxu0 %v32
  %768 = vmatmul.f32.gmra.mxu0 %v688
  %v769 = vpop.f32.mrf.mxu0
  %v770 = vadd.f32 0.0, %v769
  %771 = vdwg.mxu0
  %v772 = vadd.f32 %v117, %v770
  %v773 = vadd.f32 %v772, %v46
  %v774 = vadd.f32 %v773, %v773
  %v775 = vsel %vm132, %v774, %v773
  %v776 = vxor.u32 %v775, 2147483648
  %v777 = vmul.f32 %v776, 1.442695
  %v778 = vpow.pop %v777
  %v779 = vadd.f32 %v778, 1.0
  %v780 = vrcp.pop %v779
  %v781 = vmul.f32 %v779, %v780
  %v782 = vsub.f32 1.0, %v781
  %v783 = vmul.f32 %v780, %v782
  %v784 = vadd.f32 %v780, %v783
  %vm785 = vweird.f32 %v779
  %vm786 = vweird.f32 %v780
  %vm787 = vmor %vm785, %vm786
  %v788 = vsel %vm787, %v780, %v784
  %v789 = vand.u32 2147483647, %v779
  %vm790 = vcmp.eq.f32.partialorder %v789, 8.507059e+37
  %v791 = vand.u32 %v779, 2147483648
  %v792 = vor.u32 1.1754944e-38, %v791
  %v793 = vsel %vm790, %v792, %v788
  %v794 = vmul.f32 1.0, %v793
  %v795 = vadd.f32 %v794, %v794
  %v796 = vsub.f32 %v795, 1.0
  %v797 = vsel %vm132, %v796, %v794
  %v798 = vmul.f32 %v797, %v653
  %800 = vrot.lane.b32.xlu0 %v797, 96
  %v801 = vpop.permute.xlu0 %800
  %v803 = vmul.f32 %v797, %v801
  %805 = vrot.lane.b32.xlu0 %v803, 96
  %v806 = vpop.permute.xlu0 %805
  %v808 = vadd.f32 %v798, %v806
  %v809 = vtanh.pop %v808
  %811 = vrot.lane.b32.xlu0 %v809, 96
  %v812 = vpop.permute.xlu0 %811
  %v814 = vmul.f32 %v797, %v812
  %816 = vrot.lane.b32.xlu0 %v751, 32
  %v817 = vpop.permute.xlu0 %816
  %v818 = vsel %vm133, %v817, 0
  %820 = vmatpush.msra.mxu0 0.0
  %821 = vmatpush.msra.mxu0 0.0
  %822 = vmatpush.msra.mxu0 0.0
  %823 = vmatpush.msra.mxu0 0.0
  %824 = vmatpush.msra.mxu0 0.0
  %825 = vmatpush.msra.mxu0 0.0
  %826 = vmatpush.msra.mxu0 0.0
  %827 = vmatpush.msra.mxu0 0.0
  %828 = vmatpush.msra.mxu0 0.0
  %829 = vmatpush.msra.mxu0 0.0
  %830 = vmatpush.msra.mxu0 0.0
  %831 = vmatpush.msra.mxu0 0.0
  %832 = vmatpush.msra.mxu0 %v43
  %833 = vmatpush.msra.mxu0 %v42
  %834 = vmatpush.msra.mxu0 %v41
  %835 = vmatpush.msra.mxu0 %v40
  %836 = vmatmul.f32.gmra.mxu0 %v818
  %v837 = vpop.f32.mrf.mxu0
  %v838 = vadd.f32 0.0, %v837
  %839 = vdwg.mxu0
  %841 = vrot.lane.b32.xlu0 %v814, 32
  %v842 = vpop.permute.xlu0 %841
  %v843 = vsel %vm133, %v842, 0
  %845 = vmatpush.msra.mxu0 0.0
  %846 = vmatpush.msra.mxu0 0.0
  %847 = vmatpush.msra.mxu0 0.0
  %848 = vmatpush.msra.mxu0 0.0
  %849 = vmatpush.msra.mxu0 0.0
  %850 = vmatpush.msra.mxu0 0.0
  %851 = vmatpush.msra.mxu0 0.0
  %852 = vmatpush.msra.mxu0 0.0
  %853 = vmatpush.msra.mxu0 0.0
  %854 = vmatpush.msra.mxu0 0.0
  %855 = vmatpush.msra.mxu0 0.0
  %856 = vmatpush.msra.mxu0 0.0
  %857 = vmatpush.msra.mxu0 %v39
  %858 = vmatpush.msra.mxu0 %v38
  %859 = vmatpush.msra.mxu0 %v37
  %860 = vmatpush.msra.mxu0 %v36
  %861 = vmatmul.f32.gmra.mxu0 %v843
  %v862 = vpop.f32.mrf.mxu0
  %v863 = vadd.f32 %v838, %v862
  %864 = vdwg.mxu0
  %v865 = vadd.f32 %v863, %v50
  %v866 = vadd.f32 %v865, %v865
  %v867 = vsel %vm132, %v866, %v865
  %v868 = vxor.u32 %v867, 2147483648
  %v869 = vmul.f32 %v868, 1.442695
  %v870 = vpow.pop %v869
  %v871 = vadd.f32 %v870, 1.0
  %v872 = vrcp.pop %v871
  %v873 = vmul.f32 %v871, %v872
  %v874 = vsub.f32 1.0, %v873
  %v875 = vmul.f32 %v872, %v874
  %v876 = vadd.f32 %v872, %v875
  %vm877 = vweird.f32 %v871
  %vm878 = vweird.f32 %v872
  %vm879 = vmor %vm877, %vm878
  %v880 = vsel %vm879, %v872, %v876
  %v881 = vand.u32 2147483647, %v871
  %vm882 = vcmp.eq.f32.partialorder %v881, 8.507059e+37
  %v883 = vand.u32 %v871, 2147483648
  %v884 = vor.u32 1.1754944e-38, %v883
  %v885 = vsel %vm882, %v884, %v880
  %v886 = vmul.f32 1.0, %v885
  %v887 = vadd.f32 %v886, %v886
  %v888 = vsub.f32 %v887, 1.0
  %v889 = vsel %vm132, %v888, %v886
  %v890 = vmul.f32 %v889, %v745
  %892 = vrot.lane.b32.xlu0 %v889, 96
  %v893 = vpop.permute.xlu0 %892
  %v895 = vmul.f32 %v889, %v893
  %897 = vrot.lane.b32.xlu0 %v895, 96
  %v898 = vpop.permute.xlu0 %897
  %v900 = vadd.f32 %v890, %v898
  %v901 = vtanh.pop %v900
  %903 = vrot.lane.b32.xlu0 %v901, 96
  %v904 = vpop.permute.xlu0 %903
  %v906 = vmul.f32 %v889, %v904
  %907 = vmatpush.msra.mxu0 0.0
  %908 = vmatpush.msra.mxu0 0.0
  %909 = vmatpush.msra.mxu0 0.0
  %910 = vmatpush.msra.mxu0 0.0
  %911 = vmatpush.msra.mxu0 0.0
  %912 = vmatpush.msra.mxu0 0.0
  %913 = vmatpush.msra.mxu0 0.0
  %914 = vmatpush.msra.mxu0 0.0
  %915 = vmatpush.msra.mxu0 0.0
  %916 = vmatpush.msra.mxu0 0.0
  %917 = vmatpush.msra.mxu0 0.0
  %918 = vmatpush.msra.mxu0 0.0
  %919 = vmatpush.msra.mxu0 %v35
  %920 = vmatpush.msra.mxu0 %v34
  %921 = vmatpush.msra.mxu0 %v33
  %922 = vmatpush.msra.mxu0 %v32
  %923 = vmatmul.f32.gmra.mxu0 %v843
  %v924 = vpop.f32.mrf.mxu0
  %v925 = vadd.f32 0.0, %v924
  %926 = vdwg.mxu0
  %v927 = vadd.f32 %v120, %v925
  %v928 = vadd.f32 %v927, %v46
  %v929 = vadd.f32 %v928, %v928
  %v930 = vsel %vm132, %v929, %v928
  %v931 = vxor.u32 %v930, 2147483648
  %v932 = vmul.f32 %v931, 1.442695
  %v933 = vpow.pop %v932
  %v934 = vadd.f32 %v933, 1.0
  %v935 = vrcp.pop %v934
  %v936 = vmul.f32 %v934, %v935
  %v937 = vsub.f32 1.0, %v936
  %v938 = vmul.f32 %v935, %v937
  %v939 = vadd.f32 %v935, %v938
  %vm940 = vweird.f32 %v934
  %vm941 = vweird.f32 %v935
  %vm942 = vmor %vm940, %vm941
  %v943 = vsel %vm942, %v935, %v939
  %v944 = vand.u32 2147483647, %v934
  %vm945 = vcmp.eq.f32.partialorder %v944, 8.507059e+37
  %v946 = vand.u32 %v934, 2147483648
  %v947 = vor.u32 1.1754944e-38, %v946
  %v948 = vsel %vm945, %v947, %v943
  %v949 = vmul.f32 1.0, %v948
  %v950 = vadd.f32 %v949, %v949
  %v951 = vsub.f32 %v950, 1.0
  %v952 = vsel %vm132, %v951, %v949
  %v953 = vmul.f32 %v952, %v808
  %955 = vrot.lane.b32.xlu0 %v952, 96
  %v956 = vpop.permute.xlu0 %955
  %v958 = vmul.f32 %v952, %v956
  %960 = vrot.lane.b32.xlu0 %v958, 96
  %v961 = vpop.permute.xlu0 %960
  %v963 = vadd.f32 %v953, %v961
  %v964 = vtanh.pop %v963
  %966 = vrot.lane.b32.xlu0 %v964, 96
  %v967 = vpop.permute.xlu0 %966
  %v969 = vmul.f32 %v952, %v967
  %971 = vrot.lane.b32.xlu0 %v906, 32
  %v972 = vpop.permute.xlu0 %971
  %v973 = vsel %vm133, %v972, 0
  %975 = vmatpush.msra.mxu0 0.0
  %976 = vmatpush.msra.mxu0 0.0
  %977 = vmatpush.msra.mxu0 0.0
  %978 = vmatpush.msra.mxu0 0.0
  %979 = vmatpush.msra.mxu0 0.0
  %980 = vmatpush.msra.mxu0 0.0
  %981 = vmatpush.msra.mxu0 0.0
  %982 = vmatpush.msra.mxu0 0.0
  %983 = vmatpush.msra.mxu0 0.0
  %984 = vmatpush.msra.mxu0 0.0
  %985 = vmatpush.msra.mxu0 0.0
  %986 = vmatpush.msra.mxu0 0.0
  %987 = vmatpush.msra.mxu0 %v43
  %988 = vmatpush.msra.mxu0 %v42
  %989 = vmatpush.msra.mxu0 %v41
  %990 = vmatpush.msra.mxu0 %v40
  %991 = vmatmul.f32.gmra.mxu0 %v973
  %v992 = vpop.f32.mrf.mxu0
  %v993 = vadd.f32 0.0, %v992
  %994 = vdwg.mxu0
  %996 = vrot.lane.b32.xlu0 %v969, 32
  %v997 = vpop.permute.xlu0 %996
  %v998 = vsel %vm133, %v997, 0
  %1000 = vmatpush.msra.mxu0 0.0
  %1001 = vmatpush.msra.mxu0 0.0
  %1002 = vmatpush.msra.mxu0 0.0
  %1003 = vmatpush.msra.mxu0 0.0
  %1004 = vmatpush.msra.mxu0 0.0
  %1005 = vmatpush.msra.mxu0 0.0
  %1006 = vmatpush.msra.mxu0 0.0
  %1007 = vmatpush.msra.mxu0 0.0
  %1008 = vmatpush.msra.mxu0 0.0
  %1009 = vmatpush.msra.mxu0 0.0
  %1010 = vmatpush.msra.mxu0 0.0
  %1011 = vmatpush.msra.mxu0 0.0
  %1012 = vmatpush.msra.mxu0 %v39
  %1013 = vmatpush.msra.mxu0 %v38
  %1014 = vmatpush.msra.mxu0 %v37
  %1015 = vmatpush.msra.mxu0 %v36
  %1016 = vmatmul.f32.gmra.mxu0 %v998
  %v1017 = vpop.f32.mrf.mxu0
  %v1018 = vadd.f32 %v993, %v1017
  %1019 = vdwg.mxu0
  %v1020 = vadd.f32 %v1018, %v50
  %v1021 = vadd.f32 %v1020, %v1020
  %v1022 = vsel %vm132, %v1021, %v1020
  %v1023 = vxor.u32 %v1022, 2147483648
  %v1024 = vmul.f32 %v1023, 1.442695
  %v1025 = vpow.pop %v1024
  %v1026 = vadd.f32 %v1025, 1.0
  %v1027 = vrcp.pop %v1026
  %v1028 = vmul.f32 %v1026, %v1027
  %v1029 = vsub.f32 1.0, %v1028
  %v1030 = vmul.f32 %v1027, %v1029
  %v1031 = vadd.f32 %v1027, %v1030
  %vm1032 = vweird.f32 %v1026
  %vm1033 = vweird.f32 %v1027
  %vm1034 = vmor %vm1032, %vm1033
  %v1035 = vsel %vm1034, %v1027, %v1031
  %v1036 = vand.u32 2147483647, %v1026
  %vm1037 = vcmp.eq.f32.partialorder %v1036, 8.507059e+37
  %v1038 = vand.u32 %v1026, 2147483648
  %v1039 = vor.u32 1.1754944e-38, %v1038
  %v1040 = vsel %vm1037, %v1039, %v1035
  %v1041 = vmul.f32 1.0, %v1040
  %v1042 = vadd.f32 %v1041, %v1041
  %v1043 = vsub.f32 %v1042, 1.0
  %v1044 = vsel %vm132, %v1043, %v1041
  %v1045 = vmul.f32 %v1044, %v900
  %1047 = vrot.lane.b32.xlu0 %v1044, 96
  %v1048 = vpop.permute.xlu0 %1047
  %v1050 = vmul.f32 %v1044, %v1048
  %1052 = vrot.lane.b32.xlu0 %v1050, 96
  %v1053 = vpop.permute.xlu0 %1052
  %v1055 = vadd.f32 %v1045, %v1053
  %v1056 = vtanh.pop %v1055
  %1058 = vrot.lane.b32.xlu0 %v1056, 96
  %v1059 = vpop.permute.xlu0 %1058
  %v1061 = vmul.f32 %v1044, %v1059
  %1062 = vmatpush.msra.mxu0 0.0
  %1063 = vmatpush.msra.mxu0 0.0
  %1064 = vmatpush.msra.mxu0 0.0
  %1065 = vmatpush.msra.mxu0 0.0
  %1066 = vmatpush.msra.mxu0 0.0
  %1067 = vmatpush.msra.mxu0 0.0
  %1068 = vmatpush.msra.mxu0 0.0
  %1069 = vmatpush.msra.mxu0 0.0
  %1070 = vmatpush.msra.mxu0 0.0
  %1071 = vmatpush.msra.mxu0 0.0
  %1072 = vmatpush.msra.mxu0 0.0
  %1073 = vmatpush.msra.mxu0 0.0
  %1074 = vmatpush.msra.mxu0 %v35
  %1075 = vmatpush.msra.mxu0 %v34
  %1076 = vmatpush.msra.mxu0 %v33
  %1077 = vmatpush.msra.mxu0 %v32
  %1078 = vmatmul.f32.gmra.mxu0 %v998
  %v1079 = vpop.f32.mrf.mxu0
  %v1080 = vadd.f32 0.0, %v1079
  %1081 = vdwg.mxu0
  %v1082 = vadd.f32 %v123, %v1080
  %v1083 = vadd.f32 %v1082, %v46
  %v1084 = vadd.f32 %v1083, %v1083
  %v1085 = vsel %vm132, %v1084, %v1083
  %v1086 = vxor.u32 %v1085, 2147483648
  %v1087 = vmul.f32 %v1086, 1.442695
  %v1088 = vpow.pop %v1087
  %v1089 = vadd.f32 %v1088, 1.0
  %v1090 = vrcp.pop %v1089
  %v1091 = vmul.f32 %v1089, %v1090
  %v1092 = vsub.f32 1.0, %v1091
  %v1093 = vmul.f32 %v1090, %v1092
  %v1094 = vadd.f32 %v1090, %v1093
  %vm1095 = vweird.f32 %v1089
  %vm1096 = vweird.f32 %v1090
  %vm1097 = vmor %vm1095, %vm1096
  %v1098 = vsel %vm1097, %v1090, %v1094
  %v1099 = vand.u32 2147483647, %v1089
  %vm1100 = vcmp.eq.f32.partialorder %v1099, 8.507059e+37
  %v1101 = vand.u32 %v1089, 2147483648
  %v1102 = vor.u32 1.1754944e-38, %v1101
  %v1103 = vsel %vm1100, %v1102, %v1098
  %v1104 = vmul.f32 1.0, %v1103
  %v1105 = vadd.f32 %v1104, %v1104
  %v1106 = vsub.f32 %v1105, 1.0
  %v1107 = vsel %vm132, %v1106, %v1104
  %v1108 = vmul.f32 %v1107, %v963
  %1110 = vrot.lane.b32.xlu0 %v1107, 96
  %v1111 = vpop.permute.xlu0 %1110
  %v1113 = vmul.f32 %v1107, %v1111
  %1115 = vrot.lane.b32.xlu0 %v1113, 96
  %v1116 = vpop.permute.xlu0 %1115
  %v1118 = vadd.f32 %v1108, %v1116
  %v1119 = vtanh.pop %v1118
  %1121 = vrot.lane.b32.xlu0 %v1119, 96
  %v1122 = vpop.permute.xlu0 %1121
  %v1124 = vmul.f32 %v1107, %v1122
  %1126 = vrot.lane.b32.xlu0 %v1061, 32
  %v1127 = vpop.permute.xlu0 %1126
  %v1128 = vsel %vm133, %v1127, 0
  %1130 = vmatpush.msra.mxu0 0.0
  %1131 = vmatpush.msra.mxu0 0.0
  %1132 = vmatpush.msra.mxu0 0.0
  %1133 = vmatpush.msra.mxu0 0.0
  %1134 = vmatpush.msra.mxu0 0.0
  %1135 = vmatpush.msra.mxu0 0.0
  %1136 = vmatpush.msra.mxu0 0.0
  %1137 = vmatpush.msra.mxu0 0.0
  %1138 = vmatpush.msra.mxu0 0.0
  %1139 = vmatpush.msra.mxu0 0.0
  %1140 = vmatpush.msra.mxu0 0.0
  %1141 = vmatpush.msra.mxu0 0.0
  %1142 = vmatpush.msra.mxu0 %v43
  %1143 = vmatpush.msra.mxu0 %v42
  %1144 = vmatpush.msra.mxu0 %v41
  %1145 = vmatpush.msra.mxu0 %v40
  %1146 = vmatmul.f32.gmra.mxu0 %v1128
  %v1147 = vpop.f32.mrf.mxu0
  %v1148 = vadd.f32 0.0, %v1147
  %1149 = vdwg.mxu0
  %1151 = vrot.lane.b32.xlu0 %v1124, 32
  %v1152 = vpop.permute.xlu0 %1151
  %v1153 = vsel %vm133, %v1152, 0
  %1155 = vmatpush.msra.mxu0 0.0
  %1156 = vmatpush.msra.mxu0 0.0
  %1157 = vmatpush.msra.mxu0 0.0
  %1158 = vmatpush.msra.mxu0 0.0
  %1159 = vmatpush.msra.mxu0 0.0
  %1160 = vmatpush.msra.mxu0 0.0
  %1161 = vmatpush.msra.mxu0 0.0
  %1162 = vmatpush.msra.mxu0 0.0
  %1163 = vmatpush.msra.mxu0 0.0
  %1164 = vmatpush.msra.mxu0 0.0
  %1165 = vmatpush.msra.mxu0 0.0
  %1166 = vmatpush.msra.mxu0 0.0
  %1167 = vmatpush.msra.mxu0 %v39
  %1168 = vmatpush.msra.mxu0 %v38
  %1169 = vmatpush.msra.mxu0 %v37
  %1170 = vmatpush.msra.mxu0 %v36
  %1171 = vmatmul.f32.gmra.mxu0 %v1153
  %v1172 = vpop.f32.mrf.mxu0
  %v1173 = vadd.f32 %v1148, %v1172
  %1174 = vdwg.mxu0
  %v1175 = vadd.f32 %v1173, %v50
  %v1176 = vadd.f32 %v1175, %v1175
  %v1177 = vsel %vm132, %v1176, %v1175
  %v1178 = vxor.u32 %v1177, 2147483648
  %v1179 = vmul.f32 %v1178, 1.442695
  %v1180 = vpow.pop %v1179
  %v1181 = vadd.f32 %v1180, 1.0
  %v1182 = vrcp.pop %v1181
  %v1183 = vmul.f32 %v1181, %v1182
  %v1184 = vsub.f32 1.0, %v1183
  %v1185 = vmul.f32 %v1182, %v1184
  %v1186 = vadd.f32 %v1182, %v1185
  %vm1187 = vweird.f32 %v1181
  %vm1188 = vweird.f32 %v1182
  %vm1189 = vmor %vm1187, %vm1188
  %v1190 = vsel %vm1189, %v1182, %v1186
  %v1191 = vand.u32 2147483647, %v1181
  %vm1192 = vcmp.eq.f32.partialorder %v1191, 8.507059e+37
  %v1193 = vand.u32 %v1181, 2147483648
  %v1194 = vor.u32 1.1754944e-38, %v1193
  %v1195 = vsel %vm1192, %v1194, %v1190
  %v1196 = vmul.f32 1.0, %v1195
  %v1197 = vadd.f32 %v1196, %v1196
  %v1198 = vsub.f32 %v1197, 1.0
  %v1199 = vsel %vm132, %v1198, %v1196
  %v1200 = vmul.f32 %v1199, %v1055
  %1202 = vrot.lane.b32.xlu0 %v1199, 96
  %v1203 = vpop.permute.xlu0 %1202
  %v1205 = vmul.f32 %v1199, %v1203
  %1207 = vrot.lane.b32.xlu0 %v1205, 96
  %v1208 = vpop.permute.xlu0 %1207
  %v1210 = vadd.f32 %v1200, %v1208
  %v1211 = vtanh.pop %v1210
  %1213 = vrot.lane.b32.xlu0 %v1211, 96
  %v1214 = vpop.permute.xlu0 %1213
  %v1216 = vmul.f32 %v1199, %v1214
  %1217 = vmatpush.msra.mxu0 0.0
  %1218 = vmatpush.msra.mxu0 0.0
  %1219 = vmatpush.msra.mxu0 0.0
  %1220 = vmatpush.msra.mxu0 0.0
  %1221 = vmatpush.msra.mxu0 0.0
  %1222 = vmatpush.msra.mxu0 0.0
  %1223 = vmatpush.msra.mxu0 0.0
  %1224 = vmatpush.msra.mxu0 0.0
  %1225 = vmatpush.msra.mxu0 0.0
  %1226 = vmatpush.msra.mxu0 0.0
  %1227 = vmatpush.msra.mxu0 0.0
  %1228 = vmatpush.msra.mxu0 0.0
  %1229 = vmatpush.msra.mxu0 %v35
  %1230 = vmatpush.msra.mxu0 %v34
  %1231 = vmatpush.msra.mxu0 %v33
  %1232 = vmatpush.msra.mxu0 %v32
  %1233 = vmatmul.f32.gmra.mxu0 %v1153
  %v1234 = vpop.f32.mrf.mxu0
  %v1235 = vadd.f32 0.0, %v1234
  %1236 = vdwg.mxu0
  %v1237 = vadd.f32 %v126, %v1235
  %v1238 = vadd.f32 %v1237, %v46
  %v1239 = vadd.f32 %v1238, %v1238
  %v1240 = vsel %vm132, %v1239, %v1238
  %v1241 = vxor.u32 %v1240, 2147483648
  %v1242 = vmul.f32 %v1241, 1.442695
  %v1243 = vpow.pop %v1242
  %v1244 = vadd.f32 %v1243, 1.0
  %v1245 = vrcp.pop %v1244
  %v1246 = vmul.f32 %v1244, %v1245
  %v1247 = vsub.f32 1.0, %v1246
  %v1248 = vmul.f32 %v1245, %v1247
  %v1249 = vadd.f32 %v1245, %v1248
  %vm1250 = vweird.f32 %v1244
  %vm1251 = vweird.f32 %v1245
  %vm1252 = vmor %vm1250, %vm1251
  %v1253 = vsel %vm1252, %v1245, %v1249
  %v1254 = vand.u32 2147483647, %v1244
  %vm1255 = vcmp.eq.f32.partialorder %v1254, 8.507059e+37
  %v1256 = vand.u32 %v1244, 2147483648
  %v1257 = vor.u32 1.1754944e-38, %v1256
  %v1258 = vsel %vm1255, %v1257, %v1253
  %v1259 = vmul.f32 1.0, %v1258
  %v1260 = vadd.f32 %v1259, %v1259
  %v1261 = vsub.f32 %v1260, 1.0
  %v1262 = vsel %vm132, %v1261, %v1259
  %v1263 = vmul.f32 %v1262, %v1118
  %1265 = vrot.lane.b32.xlu0 %v1262, 96
  %v1266 = vpop.permute.xlu0 %1265
  %v1268 = vmul.f32 %v1262, %v1266
  %1270 = vrot.lane.b32.xlu0 %v1268, 96
  %v1271 = vpop.permute.xlu0 %1270
  %v1273 = vadd.f32 %v1263, %v1271
  %v1274 = vtanh.pop %v1273
  %1276 = vrot.lane.b32.xlu0 %v1274, 96
  %v1277 = vpop.permute.xlu0 %1276
  %v1279 = vmul.f32 %v1262, %v1277
  %1281 = vrot.lane.b32.xlu0 %v1216, 32
  %v1282 = vpop.permute.xlu0 %1281
  %v1283 = vsel %vm133, %v1282, 0
  %1285 = vmatpush.msra.mxu0 0.0
  %1286 = vmatpush.msra.mxu0 0.0
  %1287 = vmatpush.msra.mxu0 0.0
  %1288 = vmatpush.msra.mxu0 0.0
  %1289 = vmatpush.msra.mxu0 0.0
  %1290 = vmatpush.msra.mxu0 0.0
  %1291 = vmatpush.msra.mxu0 0.0
  %1292 = vmatpush.msra.mxu0 0.0
  %1293 = vmatpush.msra.mxu0 0.0
  %1294 = vmatpush.msra.mxu0 0.0
  %1295 = vmatpush.msra.mxu0 0.0
  %1296 = vmatpush.msra.mxu0 0.0
  %1297 = vmatpush.msra.mxu0 %v43
  %1298 = vmatpush.msra.mxu0 %v42
  %1299 = vmatpush.msra.mxu0 %v41
  %1300 = vmatpush.msra.mxu0 %v40
  %1301 = vmatmul.f32.gmra.mxu0 %v1283
  %v1302 = vpop.f32.mrf.mxu0
  %v1303 = vadd.f32 0.0, %v1302
  %1304 = vdwg.mxu0
  %1306 = vrot.lane.b32.xlu0 %v1279, 32
  %v1307 = vpop.permute.xlu0 %1306
  %v1308 = vsel %vm133, %v1307, 0
  %1310 = vmatpush.msra.mxu0 0.0
  %1311 = vmatpush.msra.mxu0 0.0
  %1312 = vmatpush.msra.mxu0 0.0
  %1313 = vmatpush.msra.mxu0 0.0
  %1314 = vmatpush.msra.mxu0 0.0
  %1315 = vmatpush.msra.mxu0 0.0
  %1316 = vmatpush.msra.mxu0 0.0
  %1317 = vmatpush.msra.mxu0 0.0
  %1318 = vmatpush.msra.mxu0 0.0
  %1319 = vmatpush.msra.mxu0 0.0
  %1320 = vmatpush.msra.mxu0 0.0
  %1321 = vmatpush.msra.mxu0 0.0
  %1322 = vmatpush.msra.mxu0 %v39
  %1323 = vmatpush.msra.mxu0 %v38
  %1324 = vmatpush.msra.mxu0 %v37
  %1325 = vmatpush.msra.mxu0 %v36
  %1326 = vmatmul.f32.gmra.mxu0 %v1308
  %v1327 = vpop.f32.mrf.mxu0
  %v1328 = vadd.f32 %v1303, %v1327
  %1329 = vdwg.mxu0
  %v1330 = vadd.f32 %v1328, %v50
  %v1331 = vadd.f32 %v1330, %v1330
  %v1332 = vsel %vm132, %v1331, %v1330
  %v1333 = vxor.u32 %v1332, 2147483648
  %v1334 = vmul.f32 %v1333, 1.442695
  %v1335 = vpow.pop %v1334
  %v1336 = vadd.f32 %v1335, 1.0
  %v1337 = vrcp.pop %v1336
  %v1338 = vmul.f32 %v1336, %v1337
  %v1339 = vsub.f32 1.0, %v1338
  %v1340 = vmul.f32 %v1337, %v1339
  %v1341 = vadd.f32 %v1337, %v1340
  %vm1342 = vweird.f32 %v1336
  %vm1343 = vweird.f32 %v1337
  %vm1344 = vmor %vm1342, %vm1343
  %v1345 = vsel %vm1344, %v1337, %v1341
  %v1346 = vand.u32 2147483647, %v1336
  %vm1347 = vcmp.eq.f32.partialorder %v1346, 8.507059e+37
  %v1348 = vand.u32 %v1336, 2147483648
  %v1349 = vor.u32 1.1754944e-38, %v1348
  %v1350 = vsel %vm1347, %v1349, %v1345
  %v1351 = vmul.f32 1.0, %v1350
  %v1352 = vadd.f32 %v1351, %v1351
  %v1353 = vsub.f32 %v1352, 1.0
  %v1354 = vsel %vm132, %v1353, %v1351
  %v1355 = vmul.f32 %v1354, %v1210
  %1357 = vrot.lane.b32.xlu0 %v1354, 96
  %v1358 = vpop.permute.xlu0 %1357
  %v1360 = vmul.f32 %v1354, %v1358
  %1362 = vrot.lane.b32.xlu0 %v1360, 96
  %v1363 = vpop.permute.xlu0 %1362
  %v1365 = vadd.f32 %v1355, %v1363
  %v1366 = vtanh.pop %v1365
  %1368 = vrot.lane.b32.xlu0 %v1366, 96
  %v1369 = vpop.permute.xlu0 %1368
  %v1371 = vmul.f32 %v1354, %v1369
  %v1372 = vld [vmem:[%s7] sm:$0xff]
  %v1373 = vld [vmem:[%s7 + $0x8] sm:$0xff]
  %v1374 = vld [vmem:[%s7 + $0x10] sm:$0xff]
  %v1375 = vld [vmem:[%s7 + $0x18] sm:$0xff]
  %v1376 = vld [vmem:[%s8] sm:$0x1]
  %v1378 = vperm.slane %v1376, 0
  %1381 = vrot.lane.b32.xlu0 %v1371, 32
  %v1382 = vpop.permute.xlu0 %1381
  %v1383 = vsel %vm133, %v1382, 0
  %1385 = vmatpush.msra.mxu0 0.0
  %1386 = vmatpush.msra.mxu0 0.0
  %1387 = vmatpush.msra.mxu0 0.0
  %1388 = vmatpush.msra.mxu0 0.0
  %1389 = vmatpush.msra.mxu0 0.0
  %1390 = vmatpush.msra.mxu0 0.0
  %1391 = vmatpush.msra.mxu0 0.0
  %1392 = vmatpush.msra.mxu0 0.0
  %1393 = vmatpush.msra.mxu0 0.0
  %1394 = vmatpush.msra.mxu0 0.0
  %1395 = vmatpush.msra.mxu0 0.0
  %1396 = vmatpush.msra.mxu0 0.0
  %1397 = vmatpush.msra.mxu0 %v1375
  %1398 = vmatpush.msra.mxu0 %v1374
  %1399 = vmatpush.msra.mxu0 %v1373
  %1400 = vmatpush.msra.mxu0 %v1372
  %1401 = vmatmul.f32.gmra.mxu0 %v1383
  %v1402 = vpop.f32.mrf.mxu0
  %v1403 = vadd.f32 %v1378, %v1402
  %1404 = vdwg.mxu0
  %1405 = vst [vmem:[%s9] sm:$0xff] %v1403
  // Predicated region
  $region38: #{lstm_net_forward.1} parent=0 // pred_check
    _
  $region39: #{lstm_net_forward.1} parent=0 // pred_check_branch
    %1407 = sbr.rel (0) target = $region41
  $region40: #{lstm_net_forward.1} parent=0 // pred_region
    _
  $region41: #{lstm_net_forward.1} parent=0 // pred_fallthru
    _
  // Predicated region
  $region42: #{lstm_net_forward.1} parent=0 // pred_check
    _
  $region43: #{lstm_net_forward.1} parent=0 // pred_check_branch
    %1409 = sbr.rel (0) target = $region45
  $region44: #{lstm_net_forward.1} parent=0 // pred_region
    _
  $region45: #{lstm_net_forward.1} parent=0 // pred_fallthru
    _

</llo_original>
